<compile_context>
chip_gen: v6e
topology: v6e:2x2x1
jax: 0.10.0
libtpu: 0.0.40
codegen_flags: <defaults>
</compile_context>

<pallas_src>
import jax
import jax.numpy as jnp
from jax.experimental import pallas as pl
from jax.experimental.pallas import tpu as pltpu


# ------------------------- model configuration -------------------------
# Matches VAE(input_dim=64, encoding_dim=16,
#             layers=[(64, 32, 'sigmoid'), (32, 16, 'relu')]).
# Note: the PyTorch module's decode() only type-checks when
# encoding_dim == layers[-1][1], so encoding_dim = 16.
INPUT_DIM = 64
ENCODING_DIM = 16
LAYERS = [(64, 32, "sigmoid"), (32, 16, "relu")]
FEAT = 128          # lane-padded feature width (one full vreg of lanes)
BATCH = 512         # demo batch -> 2 grid steps at TILE_B = 256
TILE_B = 256


def _round_up(x, m):
    return ((x + m - 1) // m) * m


def _apply_act(h, act):
    if act == "relu":
        return jnp.maximum(h, 0.0)
    if act == "sigmoid":
        return jax.nn.sigmoid(h)
    return h  # 'identity'


# ------------------------------ kernel ---------------------------------
def make_vae_kernel(layers, input_dim, encoding_dim):
    """Build the Pallas kernel for the full VAE forward (static layer config).

    Lane layout (all activations are (TB, 128)):
      input slab : x at [0:D], eps at [D:D+E], zeros elsewhere
      encoder    : layer-i activation at [0:width_i]
      mv         : mu at [D:D+E], log_var at [D+E:D+2E]   (output-slab layout)
      lv         : log_var at [D:D+E]                      (aligned with mu)
      z          : valid at [D:D+E] (decoder's padded weight ignores the rest)
      output slab: recon at [0:D], mu at [D:D+E], log_var at [D+E:D+2E]
    Zero-padded weight rows guarantee junk lanes never contaminate a matmul.
    """
    enc_acts = [l[2] for l in layers]
    dec_acts = [l[2] for l in layers[::-1]]
    n = len(layers)

    def kernel(xin_ref, w_ref, b_ref, out_ref):
        f32 = jnp.float32
        xin = xin_ref[...]                                   # (TB, 128)

        # ---------------- encoder ----------------
        h = xin
        for i in range(n):
            h = jnp.dot(h, w_ref[i], preferred_element_type=f32) + b_ref[i:i + 1, :]
            h = _apply_act(h, enc_acts[i])

        # ---------- fused fc_mu / fc_var (output-slab lanes) ----------
        mv = jnp.dot(h, w_ref[n], preferred_element_type=f32) + b_ref[n:n + 1, :]
        # log_var re-emitted lane-aligned with mu for the reparameterization
        lv = jnp.dot(h, w_ref[n + 1], preferred_element_type=f32) + b_ref[n + 1:n + 2, :]

        # ---------------- reparameterize ----------------
        # z = mu + eps * exp(0.5 * log_var); eps lives at the same lanes as mu.
        z = mv + xin * jnp.exp(0.5 * lv)

        # ---------------- decoder ----------------
        d = z
        for i in range(n):
            j = n + 2 + i
            d = jnp.dot(d, w_ref[j], preferred_element_type=f32) + b_ref[j:j + 1, :]
            d = _apply_act(d, dec_acts[i])

        # ---------- single lane-dense output slab ----------
        lane = jax.lax.broadcasted_iota(jnp.int32, d.shape, 1)
        out_ref[...] = jnp.where(lane < input_dim, d, mv)

    return kernel


# --------------------------- params & packing ---------------------------
def init_params(key, layers, encoding_dim):
    """PyTorch-Linear-style init U(-1/sqrt(fan_in), 1/sqrt(fan_in)).
    Weights stored as (in, out) (transposed vs torch); biases as (1, out)."""
    params = {}

    def linear(k, fan_in, fan_out):
        kw, kb = jax.random.split(k)
        bound = 1.0 / jnp.sqrt(fan_in)
        w = jax.random.uniform(kw, (fan_in, fan_out), jnp.float32, -bound, bound)
        b = jax.random.uniform(kb, (1, fan_out), jnp.float32, -bound, bound)
        return w, b

    keys = jax.random.split(key, 2 * len(layers) + 2)
    k = 0
    for i, (din, dout, _) in enumerate(layers):
        params[f"enc_w{i}"], params[f"enc_b{i}"] = linear(keys[k], din, dout); k += 1
    params["w_mu"], params["b_mu"] = linear(keys[k], layers[-1][1], encoding_dim); k += 1
    params["w_var"], params["b_var"] = linear(keys[k], layers[-1][1], encoding_dim); k += 1
    for i, (dout, din, _) in enumerate(layers[::-1]):
        params[f"dec_w{i}"], params[f"dec_b{i}"] = linear(keys[k], din, dout); k += 1
    return params


def pack_params(params, layers, input_dim, encoding_dim, feat=FEAT):
    """Pack all linears into one zero-padded (2n+2, feat, feat) weight tensor
    and one (>=8, feat) bias tensor, laid out for the kernel's lane scheme."""
    n = len(layers)
    D, E = input_dim, encoding_dim
    assert encoding_dim == layers[-1][1], "decode() requires encoding_dim == layers[-1][1]"
    assert D + 2 * E <= feat and all(max(l[0], l[1]) <= feat for l in layers)

    n_mats = 2 * n + 2
    W = jnp.zeros((n_mats, feat, feat), jnp.float32)
    Bt = jnp.zeros((_round_up(max(n_mats, 8), 8), feat), jnp.float32)

    # encoder layers: activations live at lanes [0:width]
    for i, (din, dout, _) in enumerate(layers):
        W = W.at[i, :din, :dout].set(params[f"enc_w{i}"])
        Bt = Bt.at[i, :dout].set(params[f"enc_b{i}"].reshape(-1))

    henc = layers[-1][1]
    # fused fc_mu | fc_var, placed directly at output-slab lanes
    W = W.at[n, :henc, D:D + E].set(params["w_mu"])
    W = W.at[n, :henc, D + E:D + 2 * E].set(params["w_var"])
    Bt = Bt.at[n, D:D + E].set(params["b_mu"].reshape(-1))
    Bt = Bt.at[n, D + E:D + 2 * E].set(params["b_var"].reshape(-1))

    # fc_var again, lane-aligned with mu (for mu + eps * exp(0.5*log_var))
    W = W.at[n + 1, :henc, D:D + E].set(params["w_var"])
    Bt = Bt.at[n + 1, D:D + E].set(params["b_var"].reshape(-1))

    # decoder: first layer reads z from lanes [D:D+E]; afterwards [0:width]
    for i, (dout, din, _) in enumerate(layers[::-1]):
        w = params[f"dec_w{i}"]                 # (din, dout)
        row0 = D if i == 0 else 0
        W = W.at[n + 2 + i, row0:row0 + din, :dout].set(w)
        Bt = Bt.at[n + 2 + i, :dout].set(params[f"dec_b{i}"].reshape(-1))
    return W, Bt


# ------------------------------ wrapper ---------------------------------
def vae_forward(x, eps, w_packed, b_packed, layers,
                input_dim, encoding_dim, feat=FEAT, tile_b=TILE_B):
    D, E = input_dim, encoding_dim
    B = x.shape[0]
    tb = min(tile_b, _round_up(B, 8))
    b_pad = _round_up(B, tb)

    # single lane-dense input slab: x | eps (at mu's lanes) | zero pad
    xin = jnp.zeros((b_pad, feat), jnp.float32)
    xin = xin.at[:B, :D].set(x)
    xin = xin.at[:B, D:D + E].set(eps)

    n_mats = w_packed.shape[0]
    n_brows = b_packed.shape[0]
    kernel = make_vae_kernel(layers, D, E)

    out = pl.pallas_call(
        kernel,
        out_shape=jax.ShapeDtypeStruct((b_pad, feat), jnp.float32),
        grid=(b_pad // tb,),
        in_specs=[
            pl.BlockSpec((tb, feat), lambda i: (i, 0)),
            # constant index_maps: weights/biases DMA'd once, VMEM-resident
            pl.BlockSpec((n_mats, feat, feat), lambda i: (0, 0, 0)),
            pl.BlockSpec((n_brows, feat), lambda i: (0, 0)),
        ],
        out_specs=pl.BlockSpec((tb, feat), lambda i: (i, 0)),
        compiler_params=pltpu.CompilerParams(
            dimension_semantics=("parallel",)),
    )(xin, w_packed, b_packed)

    recon = out[:B, :D]
    mu = out[:B, D:D + E]
    logvar = out[:B, D + E:D + 2 * E]
    return recon, mu, logvar


# ----------------------------- reference --------------------------------
def vae_forward_ref(x, eps, params, layers):
    """Pure-JAX reference for correctness check (unpadded math)."""
    h = x
    for i, (_, _, act) in enumerate(layers):
        h = _apply_act(h @ params[f"enc_w{i}"] + params[f"enc_b{i}"], act)
    mu = h @ params["w_mu"] + params["b_mu"]
    logvar = h @ params["w_var"] + params["b_var"]
    z = mu + eps * jnp.exp(0.5 * logvar)
    d = z
    for i, (_, _, act) in enumerate(layers[::-1]):
        d = _apply_act(d @ params[f"dec_w{i}"] + params[f"dec_b{i}"], act)
    return d, mu, logvar


if __name__ == "__main__":
    key = jax.random.PRNGKey(0)
    k_x, k_eps, k_p = jax.random.split(key, 3)

    x = jax.random.uniform(k_x, (BATCH, INPUT_DIM), jnp.float32)
    # torch.randn_like(std) in reparameterize -> deterministic host-side normal
    # noise passed into the kernel so it can be checked against the reference.
    eps = jax.random.normal(k_eps, (BATCH, ENCODING_DIM), jnp.float32)
    params = init_params(k_p, LAYERS, ENCODING_DIM)
    w_packed, b_packed = pack_params(params, LAYERS, INPUT_DIM, ENCODING_DIM)

    recon, mu, logvar = vae_forward(x, eps, w_packed, b_packed, LAYERS,
                                    INPUT_DIM, ENCODING_DIM)
    jax.block_until_ready((recon, mu, logvar))

    r_ref, mu_ref, lv_ref = vae_forward_ref(x, eps, params, LAYERS)
    assert recon.shape == (BATCH, INPUT_DIM)
    assert mu.shape == (BATCH, ENCODING_DIM)
    assert logvar.shape == (BATCH, ENCODING_DIM)
    assert jnp.allclose(recon, r_ref, atol=1e-5)
    assert jnp.allclose(mu, mu_ref, atol=1e-5)
    assert jnp.allclose(logvar, lv_ref, atol=1e-5)

    print("KERNEL_OK")
</pallas_src>

<mosaic_0001>
module attributes {stable_mosaic.version = 11 : i64} {
  func.func @kernel(%arg0: i32, %arg1: memref<256x128xf32, #tpu.memory_space<vmem>>, %arg2: memref<6x128x128xf32, #tpu.memory_space<vmem>>, %arg3: memref<8x128xf32, #tpu.memory_space<vmem>>, %arg4: memref<256x128xf32, #tpu.memory_space<vmem>>) attributes {dimension_semantics = [#tpu.dimension_semantics<parallel>], iteration_bounds = array<i64: 2>, scalar_prefetch = 0 : i64, scratch_operands = 0 : i64, tpu.core_type = #tpu.core_type<tc>, window_params = [{transform_indices = @transform_0, window_bounds = array<i64: 256, 128>}, {pipeline_mode = #tpu.pipeline_mode<synchronous>, transform_indices = @transform_1, window_bounds = array<i64: 6, 128, 128>}, {pipeline_mode = #tpu.pipeline_mode<synchronous>, transform_indices = @transform_2, window_bounds = array<i64: 8, 128>}, {transform_indices = @transform_3, window_bounds = array<i64: 256, 128>}]} {
    %c0 = arith.constant 0 : index
    %c0_0 = arith.constant 0 : index
    %0 = vector.load %arg1[%c0, %c0_0] : memref<256x128xf32, #tpu.memory_space<vmem>>, vector<256x128xf32>
    %c0_1 = arith.constant 0 : index
    %c0_2 = arith.constant 0 : index
    %c0_3 = arith.constant 0 : index
    %1 = vector.load %arg2[%c0_1, %c0_2, %c0_3] : memref<6x128x128xf32, #tpu.memory_space<vmem>>, vector<1x128x128xf32>
    %2 = vector.shape_cast %1 : vector<1x128x128xf32> to vector<128x128xf32>
    %cst = arith.constant dense<0.000000e+00> : vector<256x128xf32>
    %3 = tpu.matmul %0, %2, %cst {dimension_numbers = #tpu.dot_dimension_numbers<[1], [0], [0], [1], [0, 0, 1, 1], [], []>} : vector<256x128xf32>, vector<128x128xf32>, vector<256x128xf32> -> vector<256x128xf32>
    %c0_4 = arith.constant 0 : index
    %c0_5 = arith.constant 0 : index
    %4 = vector.load %arg3[%c0_4, %c0_5] : memref<8x128xf32, #tpu.memory_space<vmem>>, vector<1x128xf32>
    %5 = vector.broadcast %4 : vector<1x128xf32> to vector<256x128xf32>
    %6 = arith.addf %3, %5 : vector<256x128xf32>
    %7 = arith.negf %6 : vector<256x128xf32>
    %8 = math.exp %7 : vector<256x128xf32>
    %cst_6 = arith.constant 1.000000e+00 : f32
    %9 = vector.broadcast %cst_6 : f32 to vector<256x128xf32>
    %10 = arith.addf %9, %8 : vector<256x128xf32>
    %11 = arith.divf %9, %10 : vector<256x128xf32>
    %c1 = arith.constant 1 : index
    %c0_7 = arith.constant 0 : index
    %c0_8 = arith.constant 0 : index
    %12 = vector.load %arg2[%c1, %c0_7, %c0_8] : memref<6x128x128xf32, #tpu.memory_space<vmem>>, vector<1x128x128xf32>
    %13 = vector.shape_cast %12 : vector<1x128x128xf32> to vector<128x128xf32>
    %cst_9 = arith.constant dense<0.000000e+00> : vector<256x128xf32>
    %14 = tpu.matmul %11, %13, %cst_9 {dimension_numbers = #tpu.dot_dimension_numbers<[1], [0], [0], [1], [0, 0, 1, 1], [], []>} : vector<256x128xf32>, vector<128x128xf32>, vector<256x128xf32> -> vector<256x128xf32>
    %c1_10 = arith.constant 1 : index
    %c0_11 = arith.constant 0 : index
    %15 = vector.load %arg3[%c1_10, %c0_11] : memref<8x128xf32, #tpu.memory_space<vmem>>, vector<1x128xf32>
    %16 = vector.broadcast %15 : vector<1x128xf32> to vector<256x128xf32>
    %17 = arith.addf %14, %16 : vector<256x128xf32>
    %cst_12 = arith.constant 0.000000e+00 : f32
    %18 = vector.broadcast %cst_12 : f32 to vector<256x128xf32>
    %19 = arith.maximumf %17, %18 : vector<256x128xf32>
    %c2 = arith.constant 2 : index
    %c0_13 = arith.constant 0 : index
    %c0_14 = arith.constant 0 : index
    %20 = vector.load %arg2[%c2, %c0_13, %c0_14] : memref<6x128x128xf32, #tpu.memory_space<vmem>>, vector<1x128x128xf32>
    %21 = vector.shape_cast %20 : vector<1x128x128xf32> to vector<128x128xf32>
    %cst_15 = arith.constant dense<0.000000e+00> : vector<256x128xf32>
    %22 = tpu.matmul %19, %21, %cst_15 {dimension_numbers = #tpu.dot_dimension_numbers<[1], [0], [0], [1], [0, 0, 1, 1], [], []>} : vector<256x128xf32>, vector<128x128xf32>, vector<256x128xf32> -> vector<256x128xf32>
    %c2_16 = arith.constant 2 : index
    %c0_17 = arith.constant 0 : index
    %23 = vector.load %arg3[%c2_16, %c0_17] : memref<8x128xf32, #tpu.memory_space<vmem>>, vector<1x128xf32>
    %24 = vector.broadcast %23 : vector<1x128xf32> to vector<256x128xf32>
    %25 = arith.addf %22, %24 : vector<256x128xf32>
    %c3 = arith.constant 3 : index
    %c0_18 = arith.constant 0 : index
    %c0_19 = arith.constant 0 : index
    %26 = vector.load %arg2[%c3, %c0_18, %c0_19] : memref<6x128x128xf32, #tpu.memory_space<vmem>>, vector<1x128x128xf32>
    %27 = vector.shape_cast %26 : vector<1x128x128xf32> to vector<128x128xf32>
    %cst_20 = arith.constant dense<0.000000e+00> : vector<256x128xf32>
    %28 = tpu.matmul %19, %27, %cst_20 {dimension_numbers = #tpu.dot_dimension_numbers<[1], [0], [0], [1], [0, 0, 1, 1], [], []>} : vector<256x128xf32>, vector<128x128xf32>, vector<256x128xf32> -> vector<256x128xf32>
    %c3_21 = arith.constant 3 : index
    %c0_22 = arith.constant 0 : index
    %29 = vector.load %arg3[%c3_21, %c0_22] : memref<8x128xf32, #tpu.memory_space<vmem>>, vector<1x128xf32>
    %30 = vector.broadcast %29 : vector<1x128xf32> to vector<256x128xf32>
    %31 = arith.addf %28, %30 : vector<256x128xf32>
    %cst_23 = arith.constant 5.000000e-01 : f32
    %32 = vector.broadcast %cst_23 : f32 to vector<256x128xf32>
    %33 = arith.mulf %32, %31 : vector<256x128xf32>
    %34 = math.exp %33 : vector<256x128xf32>
    %35 = arith.mulf %0, %34 : vector<256x128xf32>
    %36 = arith.addf %25, %35 : vector<256x128xf32>
    %c4 = arith.constant 4 : index
    %c0_24 = arith.constant 0 : index
    %c0_25 = arith.constant 0 : index
    %37 = vector.load %arg2[%c4, %c0_24, %c0_25] : memref<6x128x128xf32, #tpu.memory_space<vmem>>, vector<1x128x128xf32>
    %38 = vector.shape_cast %37 : vector<1x128x128xf32> to vector<128x128xf32>
    %cst_26 = arith.constant dense<0.000000e+00> : vector<256x128xf32>
    %39 = tpu.matmul %36, %38, %cst_26 {dimension_numbers = #tpu.dot_dimension_numbers<[1], [0], [0], [1], [0, 0, 1, 1], [], []>} : vector<256x128xf32>, vector<128x128xf32>, vector<256x128xf32> -> vector<256x128xf32>
    %c4_27 = arith.constant 4 : index
    %c0_28 = arith.constant 0 : index
    %40 = vector.load %arg3[%c4_27, %c0_28] : memref<8x128xf32, #tpu.memory_space<vmem>>, vector<1x128xf32>
    %41 = vector.broadcast %40 : vector<1x128xf32> to vector<256x128xf32>
    %42 = arith.addf %39, %41 : vector<256x128xf32>
    %cst_29 = arith.constant 0.000000e+00 : f32
    %43 = vector.broadcast %cst_29 : f32 to vector<256x128xf32>
    %44 = arith.maximumf %42, %43 : vector<256x128xf32>
    %c5 = arith.constant 5 : index
    %c0_30 = arith.constant 0 : index
    %c0_31 = arith.constant 0 : index
    %45 = vector.load %arg2[%c5, %c0_30, %c0_31] : memref<6x128x128xf32, #tpu.memory_space<vmem>>, vector<1x128x128xf32>
    %46 = vector.shape_cast %45 : vector<1x128x128xf32> to vector<128x128xf32>
    %cst_32 = arith.constant dense<0.000000e+00> : vector<256x128xf32>
    %47 = tpu.matmul %44, %46, %cst_32 {dimension_numbers = #tpu.dot_dimension_numbers<[1], [0], [0], [1], [0, 0, 1, 1], [], []>} : vector<256x128xf32>, vector<128x128xf32>, vector<256x128xf32> -> vector<256x128xf32>
    %c5_33 = arith.constant 5 : index
    %c0_34 = arith.constant 0 : index
    %48 = vector.load %arg3[%c5_33, %c0_34] : memref<8x128xf32, #tpu.memory_space<vmem>>, vector<1x128xf32>
    %49 = vector.broadcast %48 : vector<1x128xf32> to vector<256x128xf32>
    %50 = arith.addf %47, %49 : vector<256x128xf32>
    %51 = arith.negf %50 : vector<256x128xf32>
    %52 = math.exp %51 : vector<256x128xf32>
    %cst_35 = arith.constant 1.000000e+00 : f32
    %53 = vector.broadcast %cst_35 : f32 to vector<256x128xf32>
    %54 = arith.addf %53, %52 : vector<256x128xf32>
    %55 = arith.divf %53, %54 : vector<256x128xf32>
    %56 = tpu.iota {dimensions = array<i32: 1>} : vector<256x128xi32>
    %c64_i32 = arith.constant 64 : i32
    %57 = vector.broadcast %c64_i32 : i32 to vector<256x128xi32>
    %58 = arith.cmpi slt, %56, %57 : vector<256x128xi32>
    %59 = arith.select %58, %55, %25 : vector<256x128xi1>, vector<256x128xf32>
    %c0_36 = arith.constant 0 : index
    %c0_37 = arith.constant 0 : index
    %60 = vector.load %arg4[%c0_36, %c0_37] : memref<256x128xf32, #tpu.memory_space<vmem>>, vector<256x128xf32>
    tpu.vector_store %arg4[%c0_36, %c0_37], %59 {strides = array<i32>} : memref<256x128xf32, #tpu.memory_space<vmem>>, vector<256x128xf32>,
    return
  }
  func.func @transform_0(%arg0: i32) -> (i32, i32) {
    %c0_i32 = arith.constant 0 : i32
    %c0_i32_0 = arith.constant 0 : i32
    return %arg0, %c0_i32 : i32, i32
  }
  func.func @transform_1(%arg0: i32) -> (i32, i32, i32) {
    %c0_i32 = arith.constant 0 : i32
    %c0_i32_0 = arith.constant 0 : i32
    %c0_i32_1 = arith.constant 0 : i32
    %c0_i32_2 = arith.constant 0 : i32
    return %c0_i32, %c0_i32_0, %c0_i32_1 : i32, i32, i32
  }
  func.func @transform_2(%arg0: i32) -> (i32, i32) {
    %c0_i32 = arith.constant 0 : i32
    %c0_i32_0 = arith.constant 0 : i32
    %c0_i32_1 = arith.constant 0 : i32
    return %c0_i32, %c0_i32_0 : i32, i32
  }
  func.func @transform_3(%arg0: i32) -> (i32, i32) {
    %c0_i32 = arith.constant 0 : i32
    %c0_i32_0 = arith.constant 0 : i32
    return %arg0, %c0_i32 : i32, i32
  }
}

</mosaic_0001>

<llo_original>
// kernel: tpu_custom_call.1
$region0: #{tpu_custom_call.1}
  #allocation0 [shape = 'u32[]', space=smem, size = 0x4, offset = 0x4, fixed_abs, tag = 'smem constant byte address 0x4 - core index']
  #allocation1 [shape = 'u32[144,128]{1,0:T(1,128)}', space=vmem, size = 0x12000, scoped, tag = 'internal scratch']
  %s0 = inlined_call_operand.hbm [shape: f32[512,128], index: 0, kind: input, shape index: {}]
  %s1 = inlined_call_operand.hbm [shape: f32[6,128,128], index: 1, kind: input, shape index: {}]
  %s2 = inlined_call_operand.hbm [shape: f32[8,128], index: 2, kind: input, shape index: {}]
  %s3 = inlined_call_operand.hbm [shape: f32[512,128], index: 3, kind: output, shape index: {}]
  %s4 = sld [smem:[#allocation0]]
  $region57: #{tpu_custom_call.1} parent=0
    _
  %s6 = ssub.s32 1, %s4
  %s7 = scalar_select 0, %s6, %s4
  $region1: #{tpu_custom_call.1} parent=0
    #allocation2 [shape = 'u8[262144]{0}', space=vmem, size = 0x40000, scoped, tag = 'input window, operand 0']
    #allocation3 [shape = 's32[2]{0}', space=sflag, size = 0x8, scoped, tag = 'scoped memory for tpu_custom_call.1']
    #allocation4 [shape = 's32[2]{0}', space=sflag, size = 0x8, scoped, tag = 'scoped memory for tpu_custom_call.1']
    #allocation5 [shape = 'u8[393216]{0}', space=vmem, size = 0x60000, scoped, tag = 'input window, operand 1, single buffered']
    #allocation6 [shape = 's32[1]{0}', space=sflag, size = 0x4, scoped, tag = 'scoped memory for tpu_custom_call.1']
    #allocation7 [shape = 'u8[4096]{0}', space=vmem, size = 0x1000, scoped, tag = 'input window, operand 2, single buffered']
    #allocation8 [shape = 'u8[262144]{0}', space=vmem, size = 0x40000, scoped, tag = 'output window, operand 0']
    %8 = vsyncpa [#allocation3], 0
    %s9 = scalar_lea.sflag [#allocation3], 1
    %10 = vsyncpa %s9, 0
    %11 = vsyncpa [#allocation6], 0
    %12 = vsyncpa [#allocation4], 0
    %s13 = scalar_lea.sflag [#allocation4], 1
    %14 = vsyncpa %s13, 0
    loop: start=0, step=1, limit=4
    $region2: #{tpu_custom_call.1} parent=1 // loop_pre_header
      _
    $region3: #{tpu_custom_call.1} parent=1 // loop_header
      %s16 = sphi 0, %s20
      %p17 = scmp.ge.s32.totalorder %s16, 4
      %s26 = sphi 0, %s28
      %s29 = sphi 0, %s26
      %s30 = sphi 0, %s29
      %s46 = sphi 0, %s30
      %s50 = sphi 0, %s50
      %s52 = sphi 0, %s50
      %s53 = sphi 0, %s52
      %s67 = sphi 0, %s53
      %s71 = sphi 0, %s71
      %s73 = sphi 0, %s71
      %s74 = sphi 0, %s73
      %s88 = sphi 0, %s74
      %s94 = sphi 0, %s96
      %s97 = sphi 0, %s94
      %s98 = sphi 0, %s97
      %s114 = sphi 0, %s98
    $region4: #{tpu_custom_call.1} parent=1 // loop_header_branch
      %19 = sbr.rel (%p17) target = $region8
    $region5: #{tpu_custom_call.1} parent=1 // loop_body
      %s21 = ssub.s32 %s16, 1
      %s22 = ssub.s32 %s16, 2
      %s23 = sadd.s32 %s16, 1
      %s24 = ssub.s32 %s16, %s23
      %p25 = scmp.eq.s32.totalorder %s24, 0
      %s27 = sadd.s32 %s26, 1
      %s28 = scalar_select %p25, %s26, %s27
      %p31 = pneg %p25
      %p32 = scmp.eq.s32.totalorder %s16, 1
      %p33 = por %p31, %p32
      %p34 = scmp.ne.s32.totalorder %s26, %s29
      %p35 = scmp.eq.s32.totalorder %s16, 0
      %p36 = por %p34, %p35
      %p37 = scmp.ne.s32.totalorder %s26, %s29
      %p38 = scmp.eq.s32.totalorder %s21, 1
      %p39 = por %p37, %p38
      %p40 = scmp.ne.s32.totalorder %s29, %s30
      %p41 = scmp.eq.s32.totalorder %s21, 0
      %p42 = por %p40, %p41
      %p43 = scmp.ne.s32.totalorder %s29, %s30
      %p44 = scmp.eq.s32.totalorder %s22, 1
      %p45 = por %p43, %p44
      %p47 = scmp.ne.s32.totalorder %s30, %s46
      %p48 = scmp.eq.s32.totalorder %s22, 0
      %p49 = por %p47, %p48
      %s51 = sadd.s32 %s50, 1
      %p54 = scmp.eq.s32.totalorder %s16, 1
      %p55 = scmp.ne.s32.totalorder %s50, %s52
      %p56 = scmp.eq.s32.totalorder %s16, 0
      %p57 = por %p55, %p56
      %p58 = scmp.ne.s32.totalorder %s50, %s52
      %p59 = scmp.eq.s32.totalorder %s21, 1
      %p60 = por %p58, %p59
      %p61 = scmp.ne.s32.totalorder %s52, %s53
      %p62 = scmp.eq.s32.totalorder %s21, 0
      %p63 = por %p61, %p62
      %p64 = scmp.ne.s32.totalorder %s52, %s53
      %p65 = scmp.eq.s32.totalorder %s22, 1
      %p66 = por %p64, %p65
      %p68 = scmp.ne.s32.totalorder %s53, %s67
      %p69 = scmp.eq.s32.totalorder %s22, 0
      %p70 = por %p68, %p69
      %s72 = sadd.s32 %s71, 1
      %p75 = scmp.eq.s32.totalorder %s16, 1
      %p76 = scmp.ne.s32.totalorder %s71, %s73
      %p77 = scmp.eq.s32.totalorder %s16, 0
      %p78 = por %p76, %p77
      %p79 = scmp.ne.s32.totalorder %s71, %s73
      %p80 = scmp.eq.s32.totalorder %s21, 1
      %p81 = por %p79, %p80
      %p82 = scmp.ne.s32.totalorder %s73, %s74
      %p83 = scmp.eq.s32.totalorder %s21, 0
      %p84 = por %p82, %p83
      %p85 = scmp.ne.s32.totalorder %s73, %s74
      %p86 = scmp.eq.s32.totalorder %s22, 1
      %p87 = por %p85, %p86
      %p89 = scmp.ne.s32.totalorder %s74, %s88
      %p90 = scmp.eq.s32.totalorder %s22, 0
      %p91 = por %p89, %p90
      %s92 = ssub.s32 %s16, %s23
      %p93 = scmp.eq.s32.totalorder %s92, 0
      %s95 = sadd.s32 %s94, 1
      %s96 = scalar_select %p93, %s94, %s95
      %p99 = pneg %p93
      %p100 = scmp.eq.s32.totalorder %s16, 1
      %p101 = por %p99, %p100
      %p102 = scmp.ne.s32.totalorder %s94, %s97
      %p103 = scmp.eq.s32.totalorder %s16, 0
      %p104 = por %p102, %p103
      %p105 = scmp.ne.s32.totalorder %s94, %s97
      %p106 = scmp.eq.s32.totalorder %s21, 1
      %p107 = por %p105, %p106
      %p108 = scmp.ne.s32.totalorder %s97, %s98
      %p109 = scmp.eq.s32.totalorder %s21, 0
      %p110 = por %p108, %p109
      %p111 = scmp.ne.s32.totalorder %s97, %s98
      %p112 = scmp.eq.s32.totalorder %s22, 1
      %p113 = por %p111, %p112
      %p115 = scmp.ne.s32.totalorder %s98, %s114
      %p116 = scmp.eq.s32.totalorder %s22, 0
      %p117 = por %p115, %p116
      %p118 = scmp.le.s32.totalorder 1, %s16
      %p119 = scmp.lt.s32.totalorder %s16, 3
      %p120 = pnand %p118, %p119
      %p121 = pneg %p120
      // Predicated region
      $region9: #{tpu_custom_call.1} parent=5 // pred_check
        _
      $region10: #{tpu_custom_call.1} parent=5 // pred_check_branch
        %123 = sbr.rel (%p120) target = $region12
      $region11: #{tpu_custom_call.1} parent=5 // pred_region
        %s124 = ssub.s32 %s16, 1
        // Predicated region
        $region13: #{tpu_custom_call.1} parent=11 // pred_check
          %p125 = pneg %p63
        $region14: #{tpu_custom_call.1} parent=11 // pred_check_branch
          %127 = sbr.rel (%p125) target = $region16
        $region15: #{tpu_custom_call.1} parent=11 // pred_region
          %s129 = ssub.s32 12288, 12288
          %130 = vsyncadd [#allocation6], %s129
          %s131 = sshll.u32 [#allocation5], 4
          %s132 = int_to_ptr.vmem [resolvable:$true] %s131
          %137 = dma.hbm_to_vmem [thread:$0]  %s1, 12288, %s132, [#allocation6], 128, 128, 8
        $region16: #{tpu_custom_call.1} parent=11 // pred_fallthru
          _
        // Predicated region
        $region17: #{tpu_custom_call.1} parent=11 // pred_check
          %p138 = pneg %p84
        $region18: #{tpu_custom_call.1} parent=11 // pred_check_branch
          %140 = sbr.rel (%p138) target = $region20
        $region19: #{tpu_custom_call.1} parent=11 // pred_region
          %s142 = ssub.s32 128, 128
          %143 = vsyncadd [#allocation6], %s142
          %s145 = sshll.u32 [#allocation7], 4
          %s146 = int_to_ptr.vmem [resolvable:$true] %s145
          %148 = dma.hbm_to_vmem [thread:$0]  %s2, 128, %s146, [#allocation6]
        $region20: #{tpu_custom_call.1} parent=11 // pred_fallthru
          _
      $region12: #{tpu_custom_call.1} parent=5 // pred_fallthru
        _
      %p149 = scmp.lt.s32.totalorder %s16, 2
      // Predicated region
      $region21: #{tpu_custom_call.1} parent=5 // pred_check
        %p150 = pneg %p149
      $region22: #{tpu_custom_call.1} parent=5 // pred_check_branch
        %152 = sbr.rel (%p150) target = $region24
      $region23: #{tpu_custom_call.1} parent=5 // pred_region
        // Predicated region
        $region25: #{tpu_custom_call.1} parent=23 // pred_check
          %p153 = pneg %p36
        $region26: #{tpu_custom_call.1} parent=23 // pred_check_branch
          %155 = sbr.rel (%p153) target = $region28
        $region27: #{tpu_custom_call.1} parent=23 // pred_region
          %s156 = sand.u32 %s26, 1
          %s157 = scalar_lea.sflag [#allocation3], %s156
          %s158 = sand.u32 %s26, 1
          %s159 = smul.addr %s158, 256
          %s160 = scalar_lea.vmem [#allocation2], %s159
          %s161 = smul.u32 32, %s16
          %s163 = ssub.s32 4096, 4096
          %164 = vsyncadd %s157, %s163
          %s165 = smul.addr %s161, 128
          %s166 = scalar_lea.hbm %s0, %s165
          %s167 = sshll.u32 %s160, 4
          %s168 = int_to_ptr.vmem [resolvable:$true] %s167
          %173 = dma.hbm_to_vmem [thread:$0]  %s166, 4096, %s168, %s157, 128, 128, 8
        $region28: #{tpu_custom_call.1} parent=23 // pred_fallthru
          _
      $region24: #{tpu_custom_call.1} parent=5 // pred_fallthru
        _
      %p174 = scmp.le.s32.totalorder 1, %s16
      %p175 = scmp.lt.s32.totalorder %s16, 3
      %p176 = pnand %p174, %p175
      %p177 = pneg %p176
      // Predicated region
      $region29: #{tpu_custom_call.1} parent=5 // pred_check
        _
      $region30: #{tpu_custom_call.1} parent=5 // pred_check_branch
        %179 = sbr.rel (%p176) target = $region32
      $region31: #{tpu_custom_call.1} parent=5 // pred_region
        %s180 = ssub.s32 %s16, 1
        %s181 = sand.u32 %s29, 1
        %s182 = scalar_lea.sflag [#allocation3], %s181
        %s183 = sand.u32 %s29, 1
        %s184 = smul.addr %s183, 256
        %s185 = scalar_lea.vmem [#allocation2], %s184
        // Predicated region
        $region33: #{tpu_custom_call.1} parent=31 // pred_check
          %p186 = pneg %p42
        $region34: #{tpu_custom_call.1} parent=31 // pred_check_branch
          %188 = sbr.rel (%p186) target = $region36
        $region35: #{tpu_custom_call.1} parent=31 // pred_region
          %189 = dma.done %s182, 4096
        $region36: #{tpu_custom_call.1} parent=31 // pred_fallthru
          _
        // Predicated region
        $region37: #{tpu_custom_call.1} parent=31 // pred_check
          %p190 = pneg %p63
        $region38: #{tpu_custom_call.1} parent=31 // pred_check_branch
          %192 = sbr.rel (%p190) target = $region40
        $region39: #{tpu_custom_call.1} parent=31 // pred_region
          %193 = dma.done [#allocation6], 12288
        $region40: #{tpu_custom_call.1} parent=31 // pred_fallthru
          _
        // Predicated region
        $region41: #{tpu_custom_call.1} parent=31 // pred_check
          %p194 = pneg %p84
        $region42: #{tpu_custom_call.1} parent=31 // pred_check_branch
          %196 = sbr.rel (%p194) target = $region44
        $region43: #{tpu_custom_call.1} parent=31 // pred_region
          %197 = dma.done [#allocation6], 128
        $region44: #{tpu_custom_call.1} parent=31 // pred_fallthru
          _
        %s198 = sand.u32 %s29, 1
        %s199 = scalar_lea.sflag [#allocation3], %s198
        %s200 = sand.u32 %s29, 1
        %s201 = smul.addr %s200, 256
        %s202 = scalar_lea.vmem [#allocation2], %s201
        %p203 = pneg %p42
        %p204 = pneg %p39
        %p205 = pneg %p63
        %p206 = pneg %p60
        %p207 = pneg %p84
        %p208 = pneg %p81
        %p209 = pneg %p110
        %p210 = pneg %p107
        %s211 = sand.u32 %s97, 1
        %s212 = scalar_lea.sflag [#allocation4], %s211
        %s213 = sand.u32 %s97, 1
        %s214 = smul.addr %s213, 256
        %s215 = scalar_lea.vmem [#allocation8], %s214
        %s216 = smul.u32 32, %s21
        %s217 = smul.u32 32, %s21
        %v218 = vld [vmem:[%s185] sm:$0xff]
        %v219 = vld [vmem:[%s185 + $0x8] sm:$0xff]
        %v220 = vld [vmem:[%s185 + $0x10] sm:$0xff]
        %v221 = vld [vmem:[%s185 + $0x18] sm:$0xff]
        %v222 = vld [vmem:[%s185 + $0x20] sm:$0xff]
        %v223 = vld [vmem:[%s185 + $0x28] sm:$0xff]
        %v224 = vld [vmem:[%s185 + $0x30] sm:$0xff]
        %v225 = vld [vmem:[%s185 + $0x38] sm:$0xff]
        %v226 = vld [vmem:[%s185 + $0x40] sm:$0xff]
        %v227 = vld [vmem:[%s185 + $0x48] sm:$0xff]
        %v228 = vld [vmem:[%s185 + $0x50] sm:$0xff]
        %v229 = vld [vmem:[%s185 + $0x58] sm:$0xff]
        %v230 = vld [vmem:[%s185 + $0x60] sm:$0xff]
        %v231 = vld [vmem:[%s185 + $0x68] sm:$0xff]
        %v232 = vld [vmem:[%s185 + $0x70] sm:$0xff]
        %v233 = vld [vmem:[%s185 + $0x78] sm:$0xff]
        %v234 = vld [vmem:[%s185 + $0x80] sm:$0xff]
        %v235 = vld [vmem:[%s185 + $0x88] sm:$0xff]
        %v236 = vld [vmem:[%s185 + $0x90] sm:$0xff]
        %v237 = vld [vmem:[%s185 + $0x98] sm:$0xff]
        %v238 = vld [vmem:[%s185 + $0xa0] sm:$0xff]
        %v239 = vld [vmem:[%s185 + $0xa8] sm:$0xff]
        %v240 = vld [vmem:[%s185 + $0xb0] sm:$0xff]
        %v241 = vld [vmem:[%s185 + $0xb8] sm:$0xff]
        %v242 = vld [vmem:[%s185 + $0xc0] sm:$0xff]
        %v243 = vld [vmem:[%s185 + $0xc8] sm:$0xff]
        %v244 = vld [vmem:[%s185 + $0xd0] sm:$0xff]
        %v245 = vld [vmem:[%s185 + $0xd8] sm:$0xff]
        %v246 = vld [vmem:[%s185 + $0xe0] sm:$0xff]
        %v247 = vld [vmem:[%s185 + $0xe8] sm:$0xff]
        %v248 = vld [vmem:[%s185 + $0xf0] sm:$0xff]
        %v249 = vld [vmem:[%s185 + $0xf8] sm:$0xff]
        %v250 = vld [vmem:[#allocation5] sm:$0xff]
        %v251 = vld [vmem:[#allocation5 + $0x8] sm:$0xff]
        %v252 = vld [vmem:[#allocation5 + $0x10] sm:$0xff]
        %v253 = vld [vmem:[#allocation5 + $0x18] sm:$0xff]
        %v254 = vld [vmem:[#allocation5 + $0x20] sm:$0xff]
        %v255 = vld [vmem:[#allocation5 + $0x28] sm:$0xff]
        %v256 = vld [vmem:[#allocation5 + $0x30] sm:$0xff]
        %v257 = vld [vmem:[#allocation5 + $0x38] sm:$0xff]
        %v258 = vld [vmem:[#allocation5 + $0x40] sm:$0xff]
        %v259 = vld [vmem:[#allocation5 + $0x48] sm:$0xff]
        %v260 = vld [vmem:[#allocation5 + $0x50] sm:$0xff]
        %v261 = vld [vmem:[#allocation5 + $0x58] sm:$0xff]
        %v262 = vld [vmem:[#allocation5 + $0x60] sm:$0xff]
        %v263 = vld [vmem:[#allocation5 + $0x68] sm:$0xff]
        %v264 = vld [vmem:[#allocation5 + $0x70] sm:$0xff]
        %v265 = vld [vmem:[#allocation5 + $0x78] sm:$0xff]
        %v266 = vld [vmem:[#allocation7] sm:$0x1]
        %v267 = vlaneseq
        %v268 = vshrl.u32 %v267, 7
        %v269 = vsub.s32 0, %v268
        %v270 = vrot.slane %v266, %v269
        %271 = vmatprep.subr.mxu0 0.0
        %272 = vmatpush1.msra.mxu0 %v265
        %273 = vmatprep.subr.mxu0 0.0
        %274 = vmatpush1.msra.mxu0 %v264
        %275 = vmatprep.subr.mxu0 0.0
        %276 = vmatpush1.msra.mxu0 %v263
        %277 = vmatprep.subr.mxu0 0.0
        %278 = vmatpush1.msra.mxu0 %v262
        %279 = vmatprep.subr.mxu0 0.0
        %280 = vmatpush1.msra.mxu0 %v261
        %281 = vmatprep.subr.mxu0 0.0
        %282 = vmatpush1.msra.mxu0 %v260
        %283 = vmatprep.subr.mxu0 0.0
        %284 = vmatpush1.msra.mxu0 %v259
        %285 = vmatprep.subr.mxu0 0.0
        %286 = vmatpush1.msra.mxu0 %v258
        %287 = vmatprep.subr.mxu0 0.0
        %288 = vmatpush1.msra.mxu0 %v257
        %289 = vmatprep.subr.mxu0 0.0
        %290 = vmatpush1.msra.mxu0 %v256
        %291 = vmatprep.subr.mxu0 0.0
        %292 = vmatpush1.msra.mxu0 %v255
        %293 = vmatprep.subr.mxu0 0.0
        %294 = vmatpush1.msra.mxu0 %v254
        %295 = vmatprep.subr.mxu0 0.0
        %296 = vmatpush1.msra.mxu0 %v253
        %297 = vmatprep.subr.mxu0 0.0
        %298 = vmatpush1.msra.mxu0 %v252
        %299 = vmatprep.subr.mxu0 0.0
        %300 = vmatpush1.msra.mxu0 %v251
        %301 = vmatprep.subr.mxu0 0.0
        %302 = vmatpush1.msra.mxu0 %v250
        %303 = vmatprep.subr.mxu0 0.0
        %304 = vmatpush2.msra.mxu0 0.0
        %305 = vmatprep.subr.mxu0 0.0
        %306 = vmatpush2.msra.mxu0 0.0
        %307 = vmatprep.subr.mxu0 0.0
        %308 = vmatpush2.msra.mxu0 0.0
        %309 = vmatprep.subr.mxu0 0.0
        %310 = vmatpush2.msra.mxu0 0.0
        %311 = vmatprep.subr.mxu0 0.0
        %312 = vmatpush2.msra.mxu0 0.0
        %313 = vmatprep.subr.mxu0 0.0
        %314 = vmatpush2.msra.mxu0 0.0
        %315 = vmatprep.subr.mxu0 0.0
        %316 = vmatpush2.msra.mxu0 0.0
        %317 = vmatprep.subr.mxu0 0.0
        %318 = vmatpush2.msra.mxu0 0.0
        %319 = vmatprep.subr.mxu0 0.0
        %320 = vmatpush2.msra.mxu0 0.0
        %321 = vmatprep.subr.mxu0 0.0
        %322 = vmatpush2.msra.mxu0 0.0
        %323 = vmatprep.subr.mxu0 0.0
        %324 = vmatpush2.msra.mxu0 0.0
        %325 = vmatprep.subr.mxu0 0.0
        %326 = vmatpush2.msra.mxu0 0.0
        %327 = vmatprep.subr.mxu0 0.0
        %328 = vmatpush2.msra.mxu0 0.0
        %329 = vmatprep.subr.mxu0 0.0
        %330 = vmatpush2.msra.mxu0 0.0
        %331 = vmatprep.subr.mxu0 0.0
        %332 = vmatpush2.msra.mxu0 0.0
        %333 = vmatprep.subr.mxu0 0.0
        %334 = vmatpush2.msra.mxu0 0.0
        %335 = vmatprep.mubr.f32.mxu0 0.0
        %336 = vmatmul.mubr.f32.gmra.mxu0 %v218
        %v337 = vpop.f32.mrf.mxu0
        %v338 = vadd.f32 %v270, %v337
        %v339 = vpop.f32.mrf.mxu0
        %340 = vmatprep.mubr.f32.mxu0 0.0
        %341 = vmatmul.mubr.f32.gmra.mxu0 %v219
        %v342 = vpop.f32.mrf.mxu0
        %v343 = vadd.f32 %v270, %v342
        %v344 = vpop.f32.mrf.mxu0
        %345 = vmatprep.mubr.f32.mxu0 0.0
        %346 = vmatmul.mubr.f32.gmra.mxu0 %v220
        %v347 = vpop.f32.mrf.mxu0
        %v348 = vadd.f32 %v270, %v347
        %v349 = vpop.f32.mrf.mxu0
        %350 = vmatprep.mubr.f32.mxu0 0.0
        %351 = vmatmul.mubr.f32.gmra.mxu0 %v221
        %v352 = vpop.f32.mrf.mxu0
        %v353 = vadd.f32 %v270, %v352
        %v354 = vpop.f32.mrf.mxu0
        %355 = vmatprep.mubr.f32.mxu0 0.0
        %356 = vmatmul.mubr.f32.gmra.mxu0 %v222
        %v357 = vpop.f32.mrf.mxu0
        %v358 = vadd.f32 %v270, %v357
        %v359 = vpop.f32.mrf.mxu0
        %360 = vmatprep.mubr.f32.mxu0 0.0
        %361 = vmatmul.mubr.f32.gmra.mxu0 %v223
        %v362 = vpop.f32.mrf.mxu0
        %v363 = vadd.f32 %v270, %v362
        %v364 = vpop.f32.mrf.mxu0
        %365 = vmatprep.mubr.f32.mxu0 0.0
        %366 = vmatmul.mubr.f32.gmra.mxu0 %v224
        %v367 = vpop.f32.mrf.mxu0
        %v368 = vadd.f32 %v270, %v367
        %v369 = vpop.f32.mrf.mxu0
        %370 = vmatprep.mubr.f32.mxu0 0.0
        %371 = vmatmul.mubr.f32.gmra.mxu0 %v225
        %v372 = vpop.f32.mrf.mxu0
        %v373 = vadd.f32 %v270, %v372
        %v374 = vpop.f32.mrf.mxu0
        %375 = vmatprep.mubr.f32.mxu0 0.0
        %376 = vmatmul.mubr.f32.gmra.mxu0 %v226
        %v377 = vpop.f32.mrf.mxu0
        %v378 = vadd.f32 %v270, %v377
        %v379 = vpop.f32.mrf.mxu0
        %380 = vmatprep.mubr.f32.mxu0 0.0
        %381 = vmatmul.mubr.f32.gmra.mxu0 %v227
        %v382 = vpop.f32.mrf.mxu0
        %v383 = vadd.f32 %v270, %v382
        %v384 = vpop.f32.mrf.mxu0
        %385 = vmatprep.mubr.f32.mxu0 0.0
        %386 = vmatmul.mubr.f32.gmra.mxu0 %v228
        %v387 = vpop.f32.mrf.mxu0
        %v388 = vadd.f32 %v270, %v387
        %v389 = vpop.f32.mrf.mxu0
        %390 = vmatprep.mubr.f32.mxu0 0.0
        %391 = vmatmul.mubr.f32.gmra.mxu0 %v229
        %v392 = vpop.f32.mrf.mxu0
        %v393 = vadd.f32 %v270, %v392
        %v394 = vpop.f32.mrf.mxu0
        %395 = vmatprep.mubr.f32.mxu0 0.0
        %396 = vmatmul.mubr.f32.gmra.mxu0 %v230
        %v397 = vpop.f32.mrf.mxu0
        %v398 = vadd.f32 %v270, %v397
        %v399 = vpop.f32.mrf.mxu0
        %400 = vmatprep.mubr.f32.mxu0 0.0
        %401 = vmatmul.mubr.f32.gmra.mxu0 %v231
        %v402 = vpop.f32.mrf.mxu0
        %v403 = vadd.f32 %v270, %v402
        %v404 = vpop.f32.mrf.mxu0
        %405 = vmatprep.mubr.f32.mxu0 0.0
        %406 = vmatmul.mubr.f32.gmra.mxu0 %v232
        %v407 = vpop.f32.mrf.mxu0
        %v408 = vadd.f32 %v270, %v407
        %v409 = vpop.f32.mrf.mxu0
        %410 = vmatprep.mubr.f32.mxu0 0.0
        %411 = vmatmul.mubr.f32.gmra.mxu0 %v233
        %v412 = vpop.f32.mrf.mxu0
        %v413 = vadd.f32 %v270, %v412
        %v414 = vpop.f32.mrf.mxu0
        %415 = vmatprep.mubr.f32.mxu0 0.0
        %416 = vmatmul.mubr.f32.gmra.mxu0 %v234
        %v417 = vpop.f32.mrf.mxu0
        %v418 = vadd.f32 %v270, %v417
        %v419 = vpop.f32.mrf.mxu0
        %420 = vmatprep.mubr.f32.mxu0 0.0
        %421 = vmatmul.mubr.f32.gmra.mxu0 %v235
        %v422 = vpop.f32.mrf.mxu0
        %v423 = vadd.f32 %v270, %v422
        %v424 = vpop.f32.mrf.mxu0
        %425 = vmatprep.mubr.f32.mxu0 0.0
        %426 = vmatmul.mubr.f32.gmra.mxu0 %v236
        %v427 = vpop.f32.mrf.mxu0
        %v428 = vadd.f32 %v270, %v427
        %v429 = vpop.f32.mrf.mxu0
        %430 = vmatprep.mubr.f32.mxu0 0.0
        %431 = vmatmul.mubr.f32.gmra.mxu0 %v237
        %v432 = vpop.f32.mrf.mxu0
        %v433 = vadd.f32 %v270, %v432
        %v434 = vpop.f32.mrf.mxu0
        %435 = vmatprep.mubr.f32.mxu0 0.0
        %436 = vmatmul.mubr.f32.gmra.mxu0 %v238
        %v437 = vpop.f32.mrf.mxu0
        %v438 = vadd.f32 %v270, %v437
        %v439 = vpop.f32.mrf.mxu0
        %440 = vmatprep.mubr.f32.mxu0 0.0
        %441 = vmatmul.mubr.f32.gmra.mxu0 %v239
        %v442 = vpop.f32.mrf.mxu0
        %v443 = vadd.f32 %v270, %v442
        %v444 = vpop.f32.mrf.mxu0
        %445 = vmatprep.mubr.f32.mxu0 0.0
        %446 = vmatmul.mubr.f32.gmra.mxu0 %v240
        %v447 = vpop.f32.mrf.mxu0
        %v448 = vadd.f32 %v270, %v447
        %v449 = vpop.f32.mrf.mxu0
        %450 = vmatprep.mubr.f32.mxu0 0.0
        %451 = vmatmul.mubr.f32.gmra.mxu0 %v241
        %v452 = vpop.f32.mrf.mxu0
        %v453 = vadd.f32 %v270, %v452
        %v454 = vpop.f32.mrf.mxu0
        %455 = vmatprep.mubr.f32.mxu0 0.0
        %456 = vmatmul.mubr.f32.gmra.mxu0 %v242
        %v457 = vpop.f32.mrf.mxu0
        %v458 = vadd.f32 %v270, %v457
        %v459 = vpop.f32.mrf.mxu0
        %460 = vmatprep.mubr.f32.mxu0 0.0
        %461 = vmatmul.mubr.f32.gmra.mxu0 %v243
        %v462 = vpop.f32.mrf.mxu0
        %v463 = vadd.f32 %v270, %v462
        %v464 = vpop.f32.mrf.mxu0
        %465 = vmatprep.mubr.f32.mxu0 0.0
        %466 = vmatmul.mubr.f32.gmra.mxu0 %v244
        %v467 = vpop.f32.mrf.mxu0
        %v468 = vadd.f32 %v270, %v467
        %v469 = vpop.f32.mrf.mxu0
        %470 = vmatprep.mubr.f32.mxu0 0.0
        %471 = vmatmul.mubr.f32.gmra.mxu0 %v245
        %v472 = vpop.f32.mrf.mxu0
        %v473 = vadd.f32 %v270, %v472
        %v474 = vpop.f32.mrf.mxu0
        %475 = vmatprep.mubr.f32.mxu0 0.0
        %476 = vmatmul.mubr.f32.gmra.mxu0 %v246
        %v477 = vpop.f32.mrf.mxu0
        %v478 = vadd.f32 %v270, %v477
        %v479 = vpop.f32.mrf.mxu0
        %480 = vmatprep.mubr.f32.mxu0 0.0
        %481 = vmatmul.mubr.f32.gmra.mxu0 %v247
        %v482 = vpop.f32.mrf.mxu0
        %v483 = vadd.f32 %v270, %v482
        %v484 = vpop.f32.mrf.mxu0
        %485 = vmatprep.mubr.f32.mxu0 0.0
        %486 = vmatmul.mubr.f32.gmra.mxu0 %v248
        %v487 = vpop.f32.mrf.mxu0
        %v488 = vadd.f32 %v270, %v487
        %v489 = vpop.f32.mrf.mxu0
        %490 = vmatprep.mubr.f32.mxu0 0.0
        %491 = vmatmul.mubr.f32.gmra.mxu0 %v249
        %v492 = vpop.f32.mrf.mxu0
        %v493 = vadd.f32 %v270, %v492
        %v494 = vpop.f32.mrf.mxu0
        %495 = vdwg.mxu0
        %v496 = vxor.u32 %v338, 2147483648
        %v497 = vxor.u32 %v343, 2147483648
        %v498 = vxor.u32 %v348, 2147483648
        %v499 = vxor.u32 %v353, 2147483648
        %v500 = vxor.u32 %v358, 2147483648
        %v501 = vxor.u32 %v363, 2147483648
        %v502 = vxor.u32 %v368, 2147483648
        %v503 = vxor.u32 %v373, 2147483648
        %v504 = vxor.u32 %v378, 2147483648
        %v505 = vxor.u32 %v383, 2147483648
        %v506 = vxor.u32 %v388, 2147483648
        %v507 = vxor.u32 %v393, 2147483648
        %v508 = vxor.u32 %v398, 2147483648
        %v509 = vxor.u32 %v403, 2147483648
        %v510 = vxor.u32 %v408, 2147483648
        %v511 = vxor.u32 %v413, 2147483648
        %v512 = vxor.u32 %v418, 2147483648
        %v513 = vxor.u32 %v423, 2147483648
        %v514 = vxor.u32 %v428, 2147483648
        %v515 = vxor.u32 %v433, 2147483648
        %v516 = vxor.u32 %v438, 2147483648
        %v517 = vxor.u32 %v443, 2147483648
        %v518 = vxor.u32 %v448, 2147483648
        %v519 = vxor.u32 %v453, 2147483648
        %v520 = vxor.u32 %v458, 2147483648
        %v521 = vxor.u32 %v463, 2147483648
        %v522 = vxor.u32 %v468, 2147483648
        %v523 = vxor.u32 %v473, 2147483648
        %v524 = vxor.u32 %v478, 2147483648
        %v525 = vxor.u32 %v483, 2147483648
        %v526 = vxor.u32 %v488, 2147483648
        %v527 = vxor.u32 %v493, 2147483648
        %v528 = vmul.f32 %v496, 1.442695
        %v529 = vpow.pop %v528
        %v530 = vmul.f32 %v497, 1.442695
        %v531 = vpow.pop %v530
        %v532 = vmul.f32 %v498, 1.442695
        %v533 = vpow.pop %v532
        %v534 = vmul.f32 %v499, 1.442695
        %v535 = vpow.pop %v534
        %v536 = vmul.f32 %v500, 1.442695
        %v537 = vpow.pop %v536
        %v538 = vmul.f32 %v501, 1.442695
        %v539 = vpow.pop %v538
        %v540 = vmul.f32 %v502, 1.442695
        %v541 = vpow.pop %v540
        %v542 = vmul.f32 %v503, 1.442695
        %v543 = vpow.pop %v542
        %v544 = vmul.f32 %v504, 1.442695
        %v545 = vpow.pop %v544
        %v546 = vmul.f32 %v505, 1.442695
        %v547 = vpow.pop %v546
        %v548 = vmul.f32 %v506, 1.442695
        %v549 = vpow.pop %v548
        %v550 = vmul.f32 %v507, 1.442695
        %v551 = vpow.pop %v550
        %v552 = vmul.f32 %v508, 1.442695
        %v553 = vpow.pop %v552
        %v554 = vmul.f32 %v509, 1.442695
        %v555 = vpow.pop %v554
        %v556 = vmul.f32 %v510, 1.442695
        %v557 = vpow.pop %v556
        %v558 = vmul.f32 %v511, 1.442695
        %v559 = vpow.pop %v558
        %v560 = vmul.f32 %v512, 1.442695
        %v561 = vpow.pop %v560
        %v562 = vmul.f32 %v513, 1.442695
        %v563 = vpow.pop %v562
        %v564 = vmul.f32 %v514, 1.442695
        %v565 = vpow.pop %v564
        %v566 = vmul.f32 %v515, 1.442695
        %v567 = vpow.pop %v566
        %v568 = vmul.f32 %v516, 1.442695
        %v569 = vpow.pop %v568
        %v570 = vmul.f32 %v517, 1.442695
        %v571 = vpow.pop %v570
        %v572 = vmul.f32 %v518, 1.442695
        %v573 = vpow.pop %v572
        %v574 = vmul.f32 %v519, 1.442695
        %v575 = vpow.pop %v574
        %v576 = vmul.f32 %v520, 1.442695
        %v577 = vpow.pop %v576
        %v578 = vmul.f32 %v521, 1.442695
        %v579 = vpow.pop %v578
        %v580 = vmul.f32 %v522, 1.442695
        %v581 = vpow.pop %v580
        %v582 = vmul.f32 %v523, 1.442695
        %v583 = vpow.pop %v582
        %v584 = vmul.f32 %v524, 1.442695
        %v585 = vpow.pop %v584
        %v586 = vmul.f32 %v525, 1.442695
        %v587 = vpow.pop %v586
        %v588 = vmul.f32 %v526, 1.442695
        %v589 = vpow.pop %v588
        %v590 = vmul.f32 %v527, 1.442695
        %v591 = vpow.pop %v590
        %v592 = vadd.f32 %v529, 1.0
        %v593 = vadd.f32 %v531, 1.0
        %v594 = vadd.f32 %v533, 1.0
        %v595 = vadd.f32 %v535, 1.0
        %v596 = vadd.f32 %v537, 1.0
        %v597 = vadd.f32 %v539, 1.0
        %v598 = vadd.f32 %v541, 1.0
        %v599 = vadd.f32 %v543, 1.0
        %v600 = vadd.f32 %v545, 1.0
        %v601 = vadd.f32 %v547, 1.0
        %v602 = vadd.f32 %v549, 1.0
        %v603 = vadd.f32 %v551, 1.0
        %v604 = vadd.f32 %v553, 1.0
        %v605 = vadd.f32 %v555, 1.0
        %v606 = vadd.f32 %v557, 1.0
        %v607 = vadd.f32 %v559, 1.0
        %v608 = vadd.f32 %v561, 1.0
        %v609 = vadd.f32 %v563, 1.0
        %v610 = vadd.f32 %v565, 1.0
        %v611 = vadd.f32 %v567, 1.0
        %v612 = vadd.f32 %v569, 1.0
        %v613 = vadd.f32 %v571, 1.0
        %v614 = vadd.f32 %v573, 1.0
        %v615 = vadd.f32 %v575, 1.0
        %v616 = vadd.f32 %v577, 1.0
        %v617 = vadd.f32 %v579, 1.0
        %v618 = vadd.f32 %v581, 1.0
        %v619 = vadd.f32 %v583, 1.0
        %v620 = vadd.f32 %v585, 1.0
        %v621 = vadd.f32 %v587, 1.0
        %v622 = vadd.f32 %v589, 1.0
        %v623 = vadd.f32 %v591, 1.0
        %v624 = vrcp.pop %v592
        %v625 = vmul.f32 1.0, %v624
        %v626 = vrcp.pop %v593
        %v627 = vmul.f32 1.0, %v626
        %v628 = vrcp.pop %v594
        %v629 = vmul.f32 1.0, %v628
        %v630 = vrcp.pop %v595
        %v631 = vmul.f32 1.0, %v630
        %v632 = vrcp.pop %v596
        %v633 = vmul.f32 1.0, %v632
        %v634 = vrcp.pop %v597
        %v635 = vmul.f32 1.0, %v634
        %v636 = vrcp.pop %v598
        %v637 = vmul.f32 1.0, %v636
        %v638 = vrcp.pop %v599
        %v639 = vmul.f32 1.0, %v638
        %v640 = vrcp.pop %v600
        %v641 = vmul.f32 1.0, %v640
        %v642 = vrcp.pop %v601
        %v643 = vmul.f32 1.0, %v642
        %v644 = vrcp.pop %v602
        %v645 = vmul.f32 1.0, %v644
        %v646 = vrcp.pop %v603
        %v647 = vmul.f32 1.0, %v646
        %v648 = vrcp.pop %v604
        %v649 = vmul.f32 1.0, %v648
        %v650 = vrcp.pop %v605
        %v651 = vmul.f32 1.0, %v650
        %v652 = vrcp.pop %v606
        %v653 = vmul.f32 1.0, %v652
        %v654 = vrcp.pop %v607
        %v655 = vmul.f32 1.0, %v654
        %v656 = vrcp.pop %v608
        %v657 = vmul.f32 1.0, %v656
        %v658 = vrcp.pop %v609
        %v659 = vmul.f32 1.0, %v658
        %v660 = vrcp.pop %v610
        %v661 = vmul.f32 1.0, %v660
        %v662 = vrcp.pop %v611
        %v663 = vmul.f32 1.0, %v662
        %v664 = vrcp.pop %v612
        %v665 = vmul.f32 1.0, %v664
        %v666 = vrcp.pop %v613
        %v667 = vmul.f32 1.0, %v666
        %v668 = vrcp.pop %v614
        %v669 = vmul.f32 1.0, %v668
        %v670 = vrcp.pop %v615
        %v671 = vmul.f32 1.0, %v670
        %v672 = vrcp.pop %v616
        %v673 = vmul.f32 1.0, %v672
        %v674 = vrcp.pop %v617
        %v675 = vmul.f32 1.0, %v674
        %v676 = vrcp.pop %v618
        %v677 = vmul.f32 1.0, %v676
        %v678 = vrcp.pop %v619
        %v679 = vmul.f32 1.0, %v678
        %v680 = vrcp.pop %v620
        %v681 = vmul.f32 1.0, %v680
        %v682 = vrcp.pop %v621
        %v683 = vmul.f32 1.0, %v682
        %v684 = vrcp.pop %v622
        %v685 = vmul.f32 1.0, %v684
        %v686 = vrcp.pop %v623
        %v687 = vmul.f32 1.0, %v686
        %s688 = scalar_lea.vmem [#allocation5], 128
        %v689 = vld [vmem:[%s688] sm:$0xff]
        %v690 = vld [vmem:[%s688 + $0x8] sm:$0xff]
        %v691 = vld [vmem:[%s688 + $0x10] sm:$0xff]
        %v692 = vld [vmem:[%s688 + $0x18] sm:$0xff]
        %v693 = vld [vmem:[%s688 + $0x20] sm:$0xff]
        %v694 = vld [vmem:[%s688 + $0x28] sm:$0xff]
        %v695 = vld [vmem:[%s688 + $0x30] sm:$0xff]
        %v696 = vld [vmem:[%s688 + $0x38] sm:$0xff]
        %v697 = vld [vmem:[%s688 + $0x40] sm:$0xff]
        %v698 = vld [vmem:[%s688 + $0x48] sm:$0xff]
        %v699 = vld [vmem:[%s688 + $0x50] sm:$0xff]
        %v700 = vld [vmem:[%s688 + $0x58] sm:$0xff]
        %v701 = vld [vmem:[%s688 + $0x60] sm:$0xff]
        %v702 = vld [vmem:[%s688 + $0x68] sm:$0xff]
        %v703 = vld [vmem:[%s688 + $0x70] sm:$0xff]
        %v704 = vld [vmem:[%s688 + $0x78] sm:$0xff]
        %v705 = vld [vmem:[#allocation7 + $0x1] sm:$0x1]
        %v706 = vlaneseq
        %v707 = vshrl.u32 %v706, 7
        %v708 = vsub.s32 0, %v707
        %v709 = vrot.slane %v705, %v708
        %710 = vmatprep.subr.mxu0 0.0
        %711 = vmatpush1.msra.mxu0 %v704
        %712 = vmatprep.subr.mxu0 0.0
        %713 = vmatpush1.msra.mxu0 %v703
        %714 = vmatprep.subr.mxu0 0.0
        %715 = vmatpush1.msra.mxu0 %v702
        %716 = vmatprep.subr.mxu0 0.0
        %717 = vmatpush1.msra.mxu0 %v701
        %718 = vmatprep.subr.mxu0 0.0
        %719 = vmatpush1.msra.mxu0 %v700
        %720 = vmatprep.subr.mxu0 0.0
        %721 = vmatpush1.msra.mxu0 %v699
        %722 = vmatprep.subr.mxu0 0.0
        %723 = vmatpush1.msra.mxu0 %v698
        %724 = vmatprep.subr.mxu0 0.0
        %725 = vmatpush1.msra.mxu0 %v697
        %726 = vmatprep.subr.mxu0 0.0
        %727 = vmatpush1.msra.mxu0 %v696
        %728 = vmatprep.subr.mxu0 0.0
        %729 = vmatpush1.msra.mxu0 %v695
        %730 = vmatprep.subr.mxu0 0.0
        %731 = vmatpush1.msra.mxu0 %v694
        %732 = vmatprep.subr.mxu0 0.0
        %733 = vmatpush1.msra.mxu0 %v693
        %734 = vmatprep.subr.mxu0 0.0
        %735 = vmatpush1.msra.mxu0 %v692
        %736 = vmatprep.subr.mxu0 0.0
        %737 = vmatpush1.msra.mxu0 %v691
        %738 = vmatprep.subr.mxu0 0.0
        %739 = vmatpush1.msra.mxu0 %v690
        %740 = vmatprep.subr.mxu0 0.0
        %741 = vmatpush1.msra.mxu0 %v689
        %742 = vmatprep.subr.mxu0 0.0
        %743 = vmatpush2.msra.mxu0 0.0
        %744 = vmatprep.subr.mxu0 0.0
        %745 = vmatpush2.msra.mxu0 0.0
        %746 = vmatprep.subr.mxu0 0.0
        %747 = vmatpush2.msra.mxu0 0.0
        %748 = vmatprep.subr.mxu0 0.0
        %749 = vmatpush2.msra.mxu0 0.0
        %750 = vmatprep.subr.mxu0 0.0
        %751 = vmatpush2.msra.mxu0 0.0
        %752 = vmatprep.subr.mxu0 0.0
        %753 = vmatpush2.msra.mxu0 0.0
        %754 = vmatprep.subr.mxu0 0.0
        %755 = vmatpush2.msra.mxu0 0.0
        %756 = vmatprep.subr.mxu0 0.0
        %757 = vmatpush2.msra.mxu0 0.0
        %758 = vmatprep.subr.mxu0 0.0
        %759 = vmatpush2.msra.mxu0 0.0
        %760 = vmatprep.subr.mxu0 0.0
        %761 = vmatpush2.msra.mxu0 0.0
        %762 = vmatprep.subr.mxu0 0.0
        %763 = vmatpush2.msra.mxu0 0.0
        %764 = vmatprep.subr.mxu0 0.0
        %765 = vmatpush2.msra.mxu0 0.0
        %766 = vmatprep.subr.mxu0 0.0
        %767 = vmatpush2.msra.mxu0 0.0
        %768 = vmatprep.subr.mxu0 0.0
        %769 = vmatpush2.msra.mxu0 0.0
        %770 = vmatprep.subr.mxu0 0.0
        %771 = vmatpush2.msra.mxu0 0.0
        %772 = vmatprep.subr.mxu0 0.0
        %773 = vmatpush2.msra.mxu0 0.0
        %774 = vmatprep.mubr.f32.mxu0 0.0
        %775 = vmatmul.mubr.f32.gmra.mxu0 %v625
        %v776 = vpop.f32.mrf.mxu0
        %v777 = vadd.f32 %v709, %v776
        %v778 = vpop.f32.mrf.mxu0
        %779 = vmatprep.mubr.f32.mxu0 0.0
        %780 = vmatmul.mubr.f32.gmra.mxu0 %v627
        %v781 = vpop.f32.mrf.mxu0
        %v782 = vadd.f32 %v709, %v781
        %v783 = vpop.f32.mrf.mxu0
        %784 = vmatprep.mubr.f32.mxu0 0.0
        %785 = vmatmul.mubr.f32.gmra.mxu0 %v629
        %v786 = vpop.f32.mrf.mxu0
        %v787 = vadd.f32 %v709, %v786
        %v788 = vpop.f32.mrf.mxu0
        %789 = vmatprep.mubr.f32.mxu0 0.0
        %790 = vmatmul.mubr.f32.gmra.mxu0 %v631
        %v791 = vpop.f32.mrf.mxu0
        %v792 = vadd.f32 %v709, %v791
        %v793 = vpop.f32.mrf.mxu0
        %794 = vmatprep.mubr.f32.mxu0 0.0
        %795 = vmatmul.mubr.f32.gmra.mxu0 %v633
        %v796 = vpop.f32.mrf.mxu0
        %v797 = vadd.f32 %v709, %v796
        %v798 = vpop.f32.mrf.mxu0
        %799 = vmatprep.mubr.f32.mxu0 0.0
        %800 = vmatmul.mubr.f32.gmra.mxu0 %v635
        %v801 = vpop.f32.mrf.mxu0
        %v802 = vadd.f32 %v709, %v801
        %v803 = vpop.f32.mrf.mxu0
        %804 = vmatprep.mubr.f32.mxu0 0.0
        %805 = vmatmul.mubr.f32.gmra.mxu0 %v637
        %v806 = vpop.f32.mrf.mxu0
        %v807 = vadd.f32 %v709, %v806
        %v808 = vpop.f32.mrf.mxu0
        %809 = vmatprep.mubr.f32.mxu0 0.0
        %810 = vmatmul.mubr.f32.gmra.mxu0 %v639
        %v811 = vpop.f32.mrf.mxu0
        %v812 = vadd.f32 %v709, %v811
        %v813 = vpop.f32.mrf.mxu0
        %814 = vmatprep.mubr.f32.mxu0 0.0
        %815 = vmatmul.mubr.f32.gmra.mxu0 %v641
        %v816 = vpop.f32.mrf.mxu0
        %v817 = vadd.f32 %v709, %v816
        %v818 = vpop.f32.mrf.mxu0
        %819 = vmatprep.mubr.f32.mxu0 0.0
        %820 = vmatmul.mubr.f32.gmra.mxu0 %v643
        %v821 = vpop.f32.mrf.mxu0
        %v822 = vadd.f32 %v709, %v821
        %v823 = vpop.f32.mrf.mxu0
        %824 = vmatprep.mubr.f32.mxu0 0.0
        %825 = vmatmul.mubr.f32.gmra.mxu0 %v645
        %v826 = vpop.f32.mrf.mxu0
        %v827 = vadd.f32 %v709, %v826
        %v828 = vpop.f32.mrf.mxu0
        %829 = vmatprep.mubr.f32.mxu0 0.0
        %830 = vmatmul.mubr.f32.gmra.mxu0 %v647
        %v831 = vpop.f32.mrf.mxu0
        %v832 = vadd.f32 %v709, %v831
        %v833 = vpop.f32.mrf.mxu0
        %834 = vmatprep.mubr.f32.mxu0 0.0
        %835 = vmatmul.mubr.f32.gmra.mxu0 %v649
        %v836 = vpop.f32.mrf.mxu0
        %v837 = vadd.f32 %v709, %v836
        %v838 = vpop.f32.mrf.mxu0
        %839 = vmatprep.mubr.f32.mxu0 0.0
        %840 = vmatmul.mubr.f32.gmra.mxu0 %v651
        %v841 = vpop.f32.mrf.mxu0
        %v842 = vadd.f32 %v709, %v841
        %v843 = vpop.f32.mrf.mxu0
        %844 = vmatprep.mubr.f32.mxu0 0.0
        %845 = vmatmul.mubr.f32.gmra.mxu0 %v653
        %v846 = vpop.f32.mrf.mxu0
        %v847 = vadd.f32 %v709, %v846
        %v848 = vpop.f32.mrf.mxu0
        %849 = vmatprep.mubr.f32.mxu0 0.0
        %850 = vmatmul.mubr.f32.gmra.mxu0 %v655
        %v851 = vpop.f32.mrf.mxu0
        %v852 = vadd.f32 %v709, %v851
        %v853 = vpop.f32.mrf.mxu0
        %854 = vmatprep.mubr.f32.mxu0 0.0
        %855 = vmatmul.mubr.f32.gmra.mxu0 %v657
        %v856 = vpop.f32.mrf.mxu0
        %v857 = vadd.f32 %v709, %v856
        %v858 = vpop.f32.mrf.mxu0
        %859 = vmatprep.mubr.f32.mxu0 0.0
        %860 = vmatmul.mubr.f32.gmra.mxu0 %v659
        %v861 = vpop.f32.mrf.mxu0
        %v862 = vadd.f32 %v709, %v861
        %v863 = vpop.f32.mrf.mxu0
        %864 = vmatprep.mubr.f32.mxu0 0.0
        %865 = vmatmul.mubr.f32.gmra.mxu0 %v661
        %v866 = vpop.f32.mrf.mxu0
        %v867 = vadd.f32 %v709, %v866
        %v868 = vpop.f32.mrf.mxu0
        %869 = vmatprep.mubr.f32.mxu0 0.0
        %870 = vmatmul.mubr.f32.gmra.mxu0 %v663
        %v871 = vpop.f32.mrf.mxu0
        %v872 = vadd.f32 %v709, %v871
        %v873 = vpop.f32.mrf.mxu0
        %874 = vmatprep.mubr.f32.mxu0 0.0
        %875 = vmatmul.mubr.f32.gmra.mxu0 %v665
        %v876 = vpop.f32.mrf.mxu0
        %v877 = vadd.f32 %v709, %v876
        %v878 = vpop.f32.mrf.mxu0
        %879 = vmatprep.mubr.f32.mxu0 0.0
        %880 = vmatmul.mubr.f32.gmra.mxu0 %v667
        %v881 = vpop.f32.mrf.mxu0
        %v882 = vadd.f32 %v709, %v881
        %v883 = vpop.f32.mrf.mxu0
        %884 = vmatprep.mubr.f32.mxu0 0.0
        %885 = vmatmul.mubr.f32.gmra.mxu0 %v669
        %v886 = vpop.f32.mrf.mxu0
        %v887 = vadd.f32 %v709, %v886
        %v888 = vpop.f32.mrf.mxu0
        %889 = vmatprep.mubr.f32.mxu0 0.0
        %890 = vmatmul.mubr.f32.gmra.mxu0 %v671
        %v891 = vpop.f32.mrf.mxu0
        %v892 = vadd.f32 %v709, %v891
        %v893 = vpop.f32.mrf.mxu0
        %894 = vmatprep.mubr.f32.mxu0 0.0
        %895 = vmatmul.mubr.f32.gmra.mxu0 %v673
        %v896 = vpop.f32.mrf.mxu0
        %v897 = vadd.f32 %v709, %v896
        %v898 = vpop.f32.mrf.mxu0
        %899 = vmatprep.mubr.f32.mxu0 0.0
        %900 = vmatmul.mubr.f32.gmra.mxu0 %v675
        %v901 = vpop.f32.mrf.mxu0
        %v902 = vadd.f32 %v709, %v901
        %v903 = vpop.f32.mrf.mxu0
        %904 = vmatprep.mubr.f32.mxu0 0.0
        %905 = vmatmul.mubr.f32.gmra.mxu0 %v677
        %v906 = vpop.f32.mrf.mxu0
        %v907 = vadd.f32 %v709, %v906
        %v908 = vpop.f32.mrf.mxu0
        %909 = vmatprep.mubr.f32.mxu0 0.0
        %910 = vmatmul.mubr.f32.gmra.mxu0 %v679
        %v911 = vpop.f32.mrf.mxu0
        %v912 = vadd.f32 %v709, %v911
        %v913 = vpop.f32.mrf.mxu0
        %914 = vmatprep.mubr.f32.mxu0 0.0
        %915 = vmatmul.mubr.f32.gmra.mxu0 %v681
        %v916 = vpop.f32.mrf.mxu0
        %v917 = vadd.f32 %v709, %v916
        %v918 = vpop.f32.mrf.mxu0
        %919 = vmatprep.mubr.f32.mxu0 0.0
        %920 = vmatmul.mubr.f32.gmra.mxu0 %v683
        %v921 = vpop.f32.mrf.mxu0
        %v922 = vadd.f32 %v709, %v921
        %v923 = vpop.f32.mrf.mxu0
        %924 = vmatprep.mubr.f32.mxu0 0.0
        %925 = vmatmul.mubr.f32.gmra.mxu0 %v685
        %v926 = vpop.f32.mrf.mxu0
        %v927 = vadd.f32 %v709, %v926
        %v928 = vpop.f32.mrf.mxu0
        %929 = vmatprep.mubr.f32.mxu0 0.0
        %930 = vmatmul.mubr.f32.gmra.mxu0 %v687
        %v931 = vpop.f32.mrf.mxu0
        %v932 = vadd.f32 %v709, %v931
        %v933 = vpop.f32.mrf.mxu0
        %934 = vdwg.mxu0
        %v935 = vmax.f32 %v777, 0.0
        %v936 = vmax.f32 %v782, 0.0
        %v937 = vmax.f32 %v787, 0.0
        %v938 = vmax.f32 %v792, 0.0
        %v939 = vmax.f32 %v797, 0.0
        %v940 = vmax.f32 %v802, 0.0
        %v941 = vmax.f32 %v807, 0.0
        %v942 = vmax.f32 %v812, 0.0
        %v943 = vmax.f32 %v817, 0.0
        %v944 = vmax.f32 %v822, 0.0
        %v945 = vmax.f32 %v827, 0.0
        %v946 = vmax.f32 %v832, 0.0
        %v947 = vmax.f32 %v837, 0.0
        %v948 = vmax.f32 %v842, 0.0
        %v949 = vmax.f32 %v847, 0.0
        %v950 = vmax.f32 %v852, 0.0
        %v951 = vmax.f32 %v857, 0.0
        %v952 = vmax.f32 %v862, 0.0
        %v953 = vmax.f32 %v867, 0.0
        %v954 = vmax.f32 %v872, 0.0
        %v955 = vmax.f32 %v877, 0.0
        %v956 = vmax.f32 %v882, 0.0
        %v957 = vmax.f32 %v887, 0.0
        %v958 = vmax.f32 %v892, 0.0
        %v959 = vmax.f32 %v897, 0.0
        %v960 = vmax.f32 %v902, 0.0
        %v961 = vmax.f32 %v907, 0.0
        %v962 = vmax.f32 %v912, 0.0
        %v963 = vmax.f32 %v917, 0.0
        %v964 = vmax.f32 %v922, 0.0
        %v965 = vmax.f32 %v927, 0.0
        %v966 = vmax.f32 %v932, 0.0
        %s967 = scalar_lea.vmem [#allocation5], 256
        %v968 = vld [vmem:[%s967] sm:$0xff]
        %v969 = vld [vmem:[%s967 + $0x8] sm:$0xff]
        %v970 = vld [vmem:[%s967 + $0x10] sm:$0xff]
        %v971 = vld [vmem:[%s967 + $0x18] sm:$0xff]
        %v972 = vld [vmem:[%s967 + $0x20] sm:$0xff]
        %v973 = vld [vmem:[%s967 + $0x28] sm:$0xff]
        %v974 = vld [vmem:[%s967 + $0x30] sm:$0xff]
        %v975 = vld [vmem:[%s967 + $0x38] sm:$0xff]
        %v976 = vld [vmem:[%s967 + $0x40] sm:$0xff]
        %v977 = vld [vmem:[%s967 + $0x48] sm:$0xff]
        %v978 = vld [vmem:[%s967 + $0x50] sm:$0xff]
        %v979 = vld [vmem:[%s967 + $0x58] sm:$0xff]
        %v980 = vld [vmem:[%s967 + $0x60] sm:$0xff]
        %v981 = vld [vmem:[%s967 + $0x68] sm:$0xff]
        %v982 = vld [vmem:[%s967 + $0x70] sm:$0xff]
        %v983 = vld [vmem:[%s967 + $0x78] sm:$0xff]
        %v984 = vld [vmem:[#allocation7 + $0x2] sm:$0x1]
        %v985 = vlaneseq
        %v986 = vshrl.u32 %v985, 7
        %v987 = vsub.s32 0, %v986
        %v988 = vrot.slane %v984, %v987
        %989 = vmatprep.subr.mxu0 0.0
        %990 = vmatpush1.msra.mxu0 %v983
        %991 = vmatprep.subr.mxu0 0.0
        %992 = vmatpush1.msra.mxu0 %v982
        %993 = vmatprep.subr.mxu0 0.0
        %994 = vmatpush1.msra.mxu0 %v981
        %995 = vmatprep.subr.mxu0 0.0
        %996 = vmatpush1.msra.mxu0 %v980
        %997 = vmatprep.subr.mxu0 0.0
        %998 = vmatpush1.msra.mxu0 %v979
        %999 = vmatprep.subr.mxu0 0.0
        %1000 = vmatpush1.msra.mxu0 %v978
        %1001 = vmatprep.subr.mxu0 0.0
        %1002 = vmatpush1.msra.mxu0 %v977
        %1003 = vmatprep.subr.mxu0 0.0
        %1004 = vmatpush1.msra.mxu0 %v976
        %1005 = vmatprep.subr.mxu0 0.0
        %1006 = vmatpush1.msra.mxu0 %v975
        %1007 = vmatprep.subr.mxu0 0.0
        %1008 = vmatpush1.msra.mxu0 %v974
        %1009 = vmatprep.subr.mxu0 0.0
        %1010 = vmatpush1.msra.mxu0 %v973
        %1011 = vmatprep.subr.mxu0 0.0
        %1012 = vmatpush1.msra.mxu0 %v972
        %1013 = vmatprep.subr.mxu0 0.0
        %1014 = vmatpush1.msra.mxu0 %v971
        %1015 = vmatprep.subr.mxu0 0.0
        %1016 = vmatpush1.msra.mxu0 %v970
        %1017 = vmatprep.subr.mxu0 0.0
        %1018 = vmatpush1.msra.mxu0 %v969
        %1019 = vmatprep.subr.mxu0 0.0
        %1020 = vmatpush1.msra.mxu0 %v968
        %1021 = vmatprep.subr.mxu0 0.0
        %1022 = vmatpush2.msra.mxu0 0.0
        %1023 = vmatprep.subr.mxu0 0.0
        %1024 = vmatpush2.msra.mxu0 0.0
        %1025 = vmatprep.subr.mxu0 0.0
        %1026 = vmatpush2.msra.mxu0 0.0
        %1027 = vmatprep.subr.mxu0 0.0
        %1028 = vmatpush2.msra.mxu0 0.0
        %1029 = vmatprep.subr.mxu0 0.0
        %1030 = vmatpush2.msra.mxu0 0.0
        %1031 = vmatprep.subr.mxu0 0.0
        %1032 = vmatpush2.msra.mxu0 0.0
        %1033 = vmatprep.subr.mxu0 0.0
        %1034 = vmatpush2.msra.mxu0 0.0
        %1035 = vmatprep.subr.mxu0 0.0
        %1036 = vmatpush2.msra.mxu0 0.0
        %1037 = vmatprep.subr.mxu0 0.0
        %1038 = vmatpush2.msra.mxu0 0.0
        %1039 = vmatprep.subr.mxu0 0.0
        %1040 = vmatpush2.msra.mxu0 0.0
        %1041 = vmatprep.subr.mxu0 0.0
        %1042 = vmatpush2.msra.mxu0 0.0
        %1043 = vmatprep.subr.mxu0 0.0
        %1044 = vmatpush2.msra.mxu0 0.0
        %1045 = vmatprep.subr.mxu0 0.0
        %1046 = vmatpush2.msra.mxu0 0.0
        %1047 = vmatprep.subr.mxu0 0.0
        %1048 = vmatpush2.msra.mxu0 0.0
        %1049 = vmatprep.subr.mxu0 0.0
        %1050 = vmatpush2.msra.mxu0 0.0
        %1051 = vmatprep.subr.mxu0 0.0
        %1052 = vmatpush2.msra.mxu0 0.0
        %1053 = vmatprep.mubr.f32.mxu0 0.0
        %1054 = vmatmul.mubr.f32.gmra.mxu0 %v935
        %v1055 = vpop.f32.mrf.mxu0
        %v1056 = vadd.f32 %v988, %v1055
        %v1057 = vpop.f32.mrf.mxu0
        %1058 = vmatprep.mubr.f32.mxu0 0.0
        %1059 = vmatmul.mubr.f32.gmra.mxu0 %v936
        %v1060 = vpop.f32.mrf.mxu0
        %v1061 = vadd.f32 %v988, %v1060
        %v1062 = vpop.f32.mrf.mxu0
        %1063 = vmatprep.mubr.f32.mxu0 0.0
        %1064 = vmatmul.mubr.f32.gmra.mxu0 %v937
        %v1065 = vpop.f32.mrf.mxu0
        %v1066 = vadd.f32 %v988, %v1065
        %v1067 = vpop.f32.mrf.mxu0
        %1068 = vmatprep.mubr.f32.mxu0 0.0
        %1069 = vmatmul.mubr.f32.gmra.mxu0 %v938
        %v1070 = vpop.f32.mrf.mxu0
        %v1071 = vadd.f32 %v988, %v1070
        %v1072 = vpop.f32.mrf.mxu0
        %1073 = vmatprep.mubr.f32.mxu0 0.0
        %1074 = vmatmul.mubr.f32.gmra.mxu0 %v939
        %v1075 = vpop.f32.mrf.mxu0
        %v1076 = vadd.f32 %v988, %v1075
        %v1077 = vpop.f32.mrf.mxu0
        %1078 = vmatprep.mubr.f32.mxu0 0.0
        %1079 = vmatmul.mubr.f32.gmra.mxu0 %v940
        %v1080 = vpop.f32.mrf.mxu0
        %v1081 = vadd.f32 %v988, %v1080
        %v1082 = vpop.f32.mrf.mxu0
        %1083 = vmatprep.mubr.f32.mxu0 0.0
        %1084 = vmatmul.mubr.f32.gmra.mxu0 %v941
        %v1085 = vpop.f32.mrf.mxu0
        %v1086 = vadd.f32 %v988, %v1085
        %v1087 = vpop.f32.mrf.mxu0
        %1088 = vmatprep.mubr.f32.mxu0 0.0
        %1089 = vmatmul.mubr.f32.gmra.mxu0 %v942
        %v1090 = vpop.f32.mrf.mxu0
        %v1091 = vadd.f32 %v988, %v1090
        %v1092 = vpop.f32.mrf.mxu0
        %1093 = vmatprep.mubr.f32.mxu0 0.0
        %1094 = vmatmul.mubr.f32.gmra.mxu0 %v943
        %v1095 = vpop.f32.mrf.mxu0
        %v1096 = vadd.f32 %v988, %v1095
        %v1097 = vpop.f32.mrf.mxu0
        %1098 = vmatprep.mubr.f32.mxu0 0.0
        %1099 = vmatmul.mubr.f32.gmra.mxu0 %v944
        %v1100 = vpop.f32.mrf.mxu0
        %v1101 = vadd.f32 %v988, %v1100
        %v1102 = vpop.f32.mrf.mxu0
        %1103 = vmatprep.mubr.f32.mxu0 0.0
        %1104 = vmatmul.mubr.f32.gmra.mxu0 %v945
        %v1105 = vpop.f32.mrf.mxu0
        %v1106 = vadd.f32 %v988, %v1105
        %v1107 = vpop.f32.mrf.mxu0
        %1108 = vmatprep.mubr.f32.mxu0 0.0
        %1109 = vmatmul.mubr.f32.gmra.mxu0 %v946
        %v1110 = vpop.f32.mrf.mxu0
        %v1111 = vadd.f32 %v988, %v1110
        %v1112 = vpop.f32.mrf.mxu0
        %1113 = vmatprep.mubr.f32.mxu0 0.0
        %1114 = vmatmul.mubr.f32.gmra.mxu0 %v947
        %v1115 = vpop.f32.mrf.mxu0
        %v1116 = vadd.f32 %v988, %v1115
        %v1117 = vpop.f32.mrf.mxu0
        %1118 = vmatprep.mubr.f32.mxu0 0.0
        %1119 = vmatmul.mubr.f32.gmra.mxu0 %v948
        %v1120 = vpop.f32.mrf.mxu0
        %v1121 = vadd.f32 %v988, %v1120
        %v1122 = vpop.f32.mrf.mxu0
        %1123 = vmatprep.mubr.f32.mxu0 0.0
        %1124 = vmatmul.mubr.f32.gmra.mxu0 %v949
        %v1125 = vpop.f32.mrf.mxu0
        %v1126 = vadd.f32 %v988, %v1125
        %v1127 = vpop.f32.mrf.mxu0
        %1128 = vmatprep.mubr.f32.mxu0 0.0
        %1129 = vmatmul.mubr.f32.gmra.mxu0 %v950
        %v1130 = vpop.f32.mrf.mxu0
        %v1131 = vadd.f32 %v988, %v1130
        %v1132 = vpop.f32.mrf.mxu0
        %1133 = vmatprep.mubr.f32.mxu0 0.0
        %1134 = vmatmul.mubr.f32.gmra.mxu0 %v951
        %v1135 = vpop.f32.mrf.mxu0
        %v1136 = vadd.f32 %v988, %v1135
        %v1137 = vpop.f32.mrf.mxu0
        %1138 = vmatprep.mubr.f32.mxu0 0.0
        %1139 = vmatmul.mubr.f32.gmra.mxu0 %v952
        %v1140 = vpop.f32.mrf.mxu0
        %v1141 = vadd.f32 %v988, %v1140
        %v1142 = vpop.f32.mrf.mxu0
        %1143 = vmatprep.mubr.f32.mxu0 0.0
        %1144 = vmatmul.mubr.f32.gmra.mxu0 %v953
        %v1145 = vpop.f32.mrf.mxu0
        %v1146 = vadd.f32 %v988, %v1145
        %v1147 = vpop.f32.mrf.mxu0
        %1148 = vmatprep.mubr.f32.mxu0 0.0
        %1149 = vmatmul.mubr.f32.gmra.mxu0 %v954
        %v1150 = vpop.f32.mrf.mxu0
        %v1151 = vadd.f32 %v988, %v1150
        %v1152 = vpop.f32.mrf.mxu0
        %1153 = vmatprep.mubr.f32.mxu0 0.0
        %1154 = vmatmul.mubr.f32.gmra.mxu0 %v955
        %v1155 = vpop.f32.mrf.mxu0
        %v1156 = vadd.f32 %v988, %v1155
        %v1157 = vpop.f32.mrf.mxu0
        %1158 = vmatprep.mubr.f32.mxu0 0.0
        %1159 = vmatmul.mubr.f32.gmra.mxu0 %v956
        %v1160 = vpop.f32.mrf.mxu0
        %v1161 = vadd.f32 %v988, %v1160
        %v1162 = vpop.f32.mrf.mxu0
        %1163 = vmatprep.mubr.f32.mxu0 0.0
        %1164 = vmatmul.mubr.f32.gmra.mxu0 %v957
        %v1165 = vpop.f32.mrf.mxu0
        %v1166 = vadd.f32 %v988, %v1165
        %v1167 = vpop.f32.mrf.mxu0
        %1168 = vmatprep.mubr.f32.mxu0 0.0
        %1169 = vmatmul.mubr.f32.gmra.mxu0 %v958
        %v1170 = vpop.f32.mrf.mxu0
        %v1171 = vadd.f32 %v988, %v1170
        %v1172 = vpop.f32.mrf.mxu0
        %1173 = vmatprep.mubr.f32.mxu0 0.0
        %1174 = vmatmul.mubr.f32.gmra.mxu0 %v959
        %v1175 = vpop.f32.mrf.mxu0
        %v1176 = vadd.f32 %v988, %v1175
        %v1177 = vpop.f32.mrf.mxu0
        %1178 = vmatprep.mubr.f32.mxu0 0.0
        %1179 = vmatmul.mubr.f32.gmra.mxu0 %v960
        %v1180 = vpop.f32.mrf.mxu0
        %v1181 = vadd.f32 %v988, %v1180
        %v1182 = vpop.f32.mrf.mxu0
        %1183 = vmatprep.mubr.f32.mxu0 0.0
        %1184 = vmatmul.mubr.f32.gmra.mxu0 %v961
        %v1185 = vpop.f32.mrf.mxu0
        %v1186 = vadd.f32 %v988, %v1185
        %v1187 = vpop.f32.mrf.mxu0
        %1188 = vmatprep.mubr.f32.mxu0 0.0
        %1189 = vmatmul.mubr.f32.gmra.mxu0 %v962
        %v1190 = vpop.f32.mrf.mxu0
        %v1191 = vadd.f32 %v988, %v1190
        %v1192 = vpop.f32.mrf.mxu0
        %1193 = vmatprep.mubr.f32.mxu0 0.0
        %1194 = vmatmul.mubr.f32.gmra.mxu0 %v963
        %v1195 = vpop.f32.mrf.mxu0
        %v1196 = vadd.f32 %v988, %v1195
        %v1197 = vpop.f32.mrf.mxu0
        %1198 = vmatprep.mubr.f32.mxu0 0.0
        %1199 = vmatmul.mubr.f32.gmra.mxu0 %v964
        %v1200 = vpop.f32.mrf.mxu0
        %v1201 = vadd.f32 %v988, %v1200
        %v1202 = vpop.f32.mrf.mxu0
        %1203 = vmatprep.mubr.f32.mxu0 0.0
        %1204 = vmatmul.mubr.f32.gmra.mxu0 %v965
        %v1205 = vpop.f32.mrf.mxu0
        %v1206 = vadd.f32 %v988, %v1205
        %v1207 = vpop.f32.mrf.mxu0
        %1208 = vmatprep.mubr.f32.mxu0 0.0
        %1209 = vmatmul.mubr.f32.gmra.mxu0 %v966
        %v1210 = vpop.f32.mrf.mxu0
        %v1211 = vadd.f32 %v988, %v1210
        %v1212 = vpop.f32.mrf.mxu0
        %1213 = vdwg.mxu0
        %s1214 = scalar_lea.vmem [#allocation5], 384
        %v1215 = vld [vmem:[%s1214] sm:$0xff]
        %v1216 = vld [vmem:[%s1214 + $0x8] sm:$0xff]
        %v1217 = vld [vmem:[%s1214 + $0x10] sm:$0xff]
        %v1218 = vld [vmem:[%s1214 + $0x18] sm:$0xff]
        %v1219 = vld [vmem:[%s1214 + $0x20] sm:$0xff]
        %v1220 = vld [vmem:[%s1214 + $0x28] sm:$0xff]
        %v1221 = vld [vmem:[%s1214 + $0x30] sm:$0xff]
        %v1222 = vld [vmem:[%s1214 + $0x38] sm:$0xff]
        %v1223 = vld [vmem:[%s1214 + $0x40] sm:$0xff]
        %v1224 = vld [vmem:[%s1214 + $0x48] sm:$0xff]
        %v1225 = vld [vmem:[%s1214 + $0x50] sm:$0xff]
        %v1226 = vld [vmem:[%s1214 + $0x58] sm:$0xff]
        %v1227 = vld [vmem:[%s1214 + $0x60] sm:$0xff]
        %v1228 = vld [vmem:[%s1214 + $0x68] sm:$0xff]
        %v1229 = vld [vmem:[%s1214 + $0x70] sm:$0xff]
        %v1230 = vld [vmem:[%s1214 + $0x78] sm:$0xff]
        %v1231 = vld [vmem:[#allocation7 + $0x3] sm:$0x1]
        %v1232 = vlaneseq
        %v1233 = vshrl.u32 %v1232, 7
        %v1234 = vsub.s32 0, %v1233
        %v1235 = vrot.slane %v1231, %v1234
        %1236 = vmatprep.subr.mxu0 0.0
        %1237 = vmatpush1.msra.mxu0 %v1230
        %1238 = vmatprep.subr.mxu0 0.0
        %1239 = vmatpush1.msra.mxu0 %v1229
        %1240 = vmatprep.subr.mxu0 0.0
        %1241 = vmatpush1.msra.mxu0 %v1228
        %1242 = vmatprep.subr.mxu0 0.0
        %1243 = vmatpush1.msra.mxu0 %v1227
        %1244 = vmatprep.subr.mxu0 0.0
        %1245 = vmatpush1.msra.mxu0 %v1226
        %1246 = vmatprep.subr.mxu0 0.0
        %1247 = vmatpush1.msra.mxu0 %v1225
        %1248 = vmatprep.subr.mxu0 0.0
        %1249 = vmatpush1.msra.mxu0 %v1224
        %1250 = vmatprep.subr.mxu0 0.0
        %1251 = vmatpush1.msra.mxu0 %v1223
        %1252 = vmatprep.subr.mxu0 0.0
        %1253 = vmatpush1.msra.mxu0 %v1222
        %1254 = vmatprep.subr.mxu0 0.0
        %1255 = vmatpush1.msra.mxu0 %v1221
        %1256 = vmatprep.subr.mxu0 0.0
        %1257 = vmatpush1.msra.mxu0 %v1220
        %1258 = vmatprep.subr.mxu0 0.0
        %1259 = vmatpush1.msra.mxu0 %v1219
        %1260 = vmatprep.subr.mxu0 0.0
        %1261 = vmatpush1.msra.mxu0 %v1218
        %1262 = vmatprep.subr.mxu0 0.0
        %1263 = vmatpush1.msra.mxu0 %v1217
        %1264 = vmatprep.subr.mxu0 0.0
        %1265 = vmatpush1.msra.mxu0 %v1216
        %1266 = vmatprep.subr.mxu0 0.0
        %1267 = vmatpush1.msra.mxu0 %v1215
        %1268 = vmatprep.subr.mxu0 0.0
        %1269 = vmatpush2.msra.mxu0 0.0
        %1270 = vmatprep.subr.mxu0 0.0
        %1271 = vmatpush2.msra.mxu0 0.0
        %1272 = vmatprep.subr.mxu0 0.0
        %1273 = vmatpush2.msra.mxu0 0.0
        %1274 = vmatprep.subr.mxu0 0.0
        %1275 = vmatpush2.msra.mxu0 0.0
        %1276 = vmatprep.subr.mxu0 0.0
        %1277 = vmatpush2.msra.mxu0 0.0
        %1278 = vmatprep.subr.mxu0 0.0
        %1279 = vmatpush2.msra.mxu0 0.0
        %1280 = vmatprep.subr.mxu0 0.0
        %1281 = vmatpush2.msra.mxu0 0.0
        %1282 = vmatprep.subr.mxu0 0.0
        %1283 = vmatpush2.msra.mxu0 0.0
        %1284 = vmatprep.subr.mxu0 0.0
        %1285 = vmatpush2.msra.mxu0 0.0
        %1286 = vmatprep.subr.mxu0 0.0
        %1287 = vmatpush2.msra.mxu0 0.0
        %1288 = vmatprep.subr.mxu0 0.0
        %1289 = vmatpush2.msra.mxu0 0.0
        %1290 = vmatprep.subr.mxu0 0.0
        %1291 = vmatpush2.msra.mxu0 0.0
        %1292 = vmatprep.subr.mxu0 0.0
        %1293 = vmatpush2.msra.mxu0 0.0
        %1294 = vmatprep.subr.mxu0 0.0
        %1295 = vmatpush2.msra.mxu0 0.0
        %1296 = vmatprep.subr.mxu0 0.0
        %1297 = vmatpush2.msra.mxu0 0.0
        %1298 = vmatprep.subr.mxu0 0.0
        %1299 = vmatpush2.msra.mxu0 0.0
        %1300 = vmatprep.mubr.f32.mxu0 0.0
        %1301 = vmatmul.mubr.f32.gmra.mxu0 %v935
        %v1302 = vpop.f32.mrf.mxu0
        %v1303 = vadd.f32 %v1235, %v1302
        %v1304 = vpop.f32.mrf.mxu0
        %1305 = vmatprep.mubr.f32.mxu0 0.0
        %1306 = vmatmul.mubr.f32.gmra.mxu0 %v936
        %v1307 = vpop.f32.mrf.mxu0
        %v1308 = vadd.f32 %v1235, %v1307
        %v1309 = vpop.f32.mrf.mxu0
        %1310 = vmatprep.mubr.f32.mxu0 0.0
        %1311 = vmatmul.mubr.f32.gmra.mxu0 %v937
        %v1312 = vpop.f32.mrf.mxu0
        %v1313 = vadd.f32 %v1235, %v1312
        %v1314 = vpop.f32.mrf.mxu0
        %1315 = vmatprep.mubr.f32.mxu0 0.0
        %1316 = vmatmul.mubr.f32.gmra.mxu0 %v938
        %v1317 = vpop.f32.mrf.mxu0
        %v1318 = vadd.f32 %v1235, %v1317
        %v1319 = vpop.f32.mrf.mxu0
        %1320 = vmatprep.mubr.f32.mxu0 0.0
        %1321 = vmatmul.mubr.f32.gmra.mxu0 %v939
        %v1322 = vpop.f32.mrf.mxu0
        %v1323 = vadd.f32 %v1235, %v1322
        %v1324 = vpop.f32.mrf.mxu0
        %1325 = vmatprep.mubr.f32.mxu0 0.0
        %1326 = vmatmul.mubr.f32.gmra.mxu0 %v940
        %v1327 = vpop.f32.mrf.mxu0
        %v1328 = vadd.f32 %v1235, %v1327
        %v1329 = vpop.f32.mrf.mxu0
        %1330 = vmatprep.mubr.f32.mxu0 0.0
        %1331 = vmatmul.mubr.f32.gmra.mxu0 %v941
        %v1332 = vpop.f32.mrf.mxu0
        %v1333 = vadd.f32 %v1235, %v1332
        %v1334 = vpop.f32.mrf.mxu0
        %1335 = vmatprep.mubr.f32.mxu0 0.0
        %1336 = vmatmul.mubr.f32.gmra.mxu0 %v942
        %v1337 = vpop.f32.mrf.mxu0
        %v1338 = vadd.f32 %v1235, %v1337
        %v1339 = vpop.f32.mrf.mxu0
        %1340 = vmatprep.mubr.f32.mxu0 0.0
        %1341 = vmatmul.mubr.f32.gmra.mxu0 %v943
        %v1342 = vpop.f32.mrf.mxu0
        %v1343 = vadd.f32 %v1235, %v1342
        %v1344 = vpop.f32.mrf.mxu0
        %1345 = vmatprep.mubr.f32.mxu0 0.0
        %1346 = vmatmul.mubr.f32.gmra.mxu0 %v944
        %v1347 = vpop.f32.mrf.mxu0
        %v1348 = vadd.f32 %v1235, %v1347
        %v1349 = vpop.f32.mrf.mxu0
        %1350 = vmatprep.mubr.f32.mxu0 0.0
        %1351 = vmatmul.mubr.f32.gmra.mxu0 %v945
        %v1352 = vpop.f32.mrf.mxu0
        %v1353 = vadd.f32 %v1235, %v1352
        %v1354 = vpop.f32.mrf.mxu0
        %1355 = vmatprep.mubr.f32.mxu0 0.0
        %1356 = vmatmul.mubr.f32.gmra.mxu0 %v946
        %v1357 = vpop.f32.mrf.mxu0
        %v1358 = vadd.f32 %v1235, %v1357
        %v1359 = vpop.f32.mrf.mxu0
        %1360 = vmatprep.mubr.f32.mxu0 0.0
        %1361 = vmatmul.mubr.f32.gmra.mxu0 %v947
        %v1362 = vpop.f32.mrf.mxu0
        %v1363 = vadd.f32 %v1235, %v1362
        %v1364 = vpop.f32.mrf.mxu0
        %1365 = vmatprep.mubr.f32.mxu0 0.0
        %1366 = vmatmul.mubr.f32.gmra.mxu0 %v948
        %v1367 = vpop.f32.mrf.mxu0
        %v1368 = vadd.f32 %v1235, %v1367
        %v1369 = vpop.f32.mrf.mxu0
        %1370 = vmatprep.mubr.f32.mxu0 0.0
        %1371 = vmatmul.mubr.f32.gmra.mxu0 %v949
        %v1372 = vpop.f32.mrf.mxu0
        %v1373 = vadd.f32 %v1235, %v1372
        %v1374 = vpop.f32.mrf.mxu0
        %1375 = vmatprep.mubr.f32.mxu0 0.0
        %1376 = vmatmul.mubr.f32.gmra.mxu0 %v950
        %v1377 = vpop.f32.mrf.mxu0
        %v1378 = vadd.f32 %v1235, %v1377
        %v1379 = vpop.f32.mrf.mxu0
        %1380 = vmatprep.mubr.f32.mxu0 0.0
        %1381 = vmatmul.mubr.f32.gmra.mxu0 %v951
        %v1382 = vpop.f32.mrf.mxu0
        %v1383 = vadd.f32 %v1235, %v1382
        %v1384 = vpop.f32.mrf.mxu0
        %1385 = vmatprep.mubr.f32.mxu0 0.0
        %1386 = vmatmul.mubr.f32.gmra.mxu0 %v952
        %v1387 = vpop.f32.mrf.mxu0
        %v1388 = vadd.f32 %v1235, %v1387
        %v1389 = vpop.f32.mrf.mxu0
        %1390 = vmatprep.mubr.f32.mxu0 0.0
        %1391 = vmatmul.mubr.f32.gmra.mxu0 %v953
        %v1392 = vpop.f32.mrf.mxu0
        %v1393 = vadd.f32 %v1235, %v1392
        %v1394 = vpop.f32.mrf.mxu0
        %1395 = vmatprep.mubr.f32.mxu0 0.0
        %1396 = vmatmul.mubr.f32.gmra.mxu0 %v954
        %v1397 = vpop.f32.mrf.mxu0
        %v1398 = vadd.f32 %v1235, %v1397
        %v1399 = vpop.f32.mrf.mxu0
        %1400 = vmatprep.mubr.f32.mxu0 0.0
        %1401 = vmatmul.mubr.f32.gmra.mxu0 %v955
        %v1402 = vpop.f32.mrf.mxu0
        %v1403 = vadd.f32 %v1235, %v1402
        %v1404 = vpop.f32.mrf.mxu0
        %1405 = vmatprep.mubr.f32.mxu0 0.0
        %1406 = vmatmul.mubr.f32.gmra.mxu0 %v956
        %v1407 = vpop.f32.mrf.mxu0
        %v1408 = vadd.f32 %v1235, %v1407
        %v1409 = vpop.f32.mrf.mxu0
        %1410 = vmatprep.mubr.f32.mxu0 0.0
        %1411 = vmatmul.mubr.f32.gmra.mxu0 %v957
        %v1412 = vpop.f32.mrf.mxu0
        %v1413 = vadd.f32 %v1235, %v1412
        %v1414 = vpop.f32.mrf.mxu0
        %1415 = vmatprep.mubr.f32.mxu0 0.0
        %1416 = vmatmul.mubr.f32.gmra.mxu0 %v958
        %v1417 = vpop.f32.mrf.mxu0
        %v1418 = vadd.f32 %v1235, %v1417
        %v1419 = vpop.f32.mrf.mxu0
        %1420 = vmatprep.mubr.f32.mxu0 0.0
        %1421 = vmatmul.mubr.f32.gmra.mxu0 %v959
        %v1422 = vpop.f32.mrf.mxu0
        %v1423 = vadd.f32 %v1235, %v1422
        %v1424 = vpop.f32.mrf.mxu0
        %1425 = vmatprep.mubr.f32.mxu0 0.0
        %1426 = vmatmul.mubr.f32.gmra.mxu0 %v960
        %v1427 = vpop.f32.mrf.mxu0
        %v1428 = vadd.f32 %v1235, %v1427
        %v1429 = vpop.f32.mrf.mxu0
        %1430 = vmatprep.mubr.f32.mxu0 0.0
        %1431 = vmatmul.mubr.f32.gmra.mxu0 %v961
        %v1432 = vpop.f32.mrf.mxu0
        %v1433 = vadd.f32 %v1235, %v1432
        %v1434 = vpop.f32.mrf.mxu0
        %1435 = vmatprep.mubr.f32.mxu0 0.0
        %1436 = vmatmul.mubr.f32.gmra.mxu0 %v962
        %v1437 = vpop.f32.mrf.mxu0
        %v1438 = vadd.f32 %v1235, %v1437
        %v1439 = vpop.f32.mrf.mxu0
        %1440 = vmatprep.mubr.f32.mxu0 0.0
        %1441 = vmatmul.mubr.f32.gmra.mxu0 %v963
        %v1442 = vpop.f32.mrf.mxu0
        %v1443 = vadd.f32 %v1235, %v1442
        %v1444 = vpop.f32.mrf.mxu0
        %1445 = vmatprep.mubr.f32.mxu0 0.0
        %1446 = vmatmul.mubr.f32.gmra.mxu0 %v964
        %v1447 = vpop.f32.mrf.mxu0
        %v1448 = vadd.f32 %v1235, %v1447
        %v1449 = vpop.f32.mrf.mxu0
        %1450 = vmatprep.mubr.f32.mxu0 0.0
        %1451 = vmatmul.mubr.f32.gmra.mxu0 %v965
        %v1452 = vpop.f32.mrf.mxu0
        %v1453 = vadd.f32 %v1235, %v1452
        %v1454 = vpop.f32.mrf.mxu0
        %1455 = vmatprep.mubr.f32.mxu0 0.0
        %1456 = vmatmul.mubr.f32.gmra.mxu0 %v966
        %v1457 = vpop.f32.mrf.mxu0
        %v1458 = vadd.f32 %v1235, %v1457
        %v1459 = vpop.f32.mrf.mxu0
        %1460 = vdwg.mxu0
        %v1461 = vmul.f32 %v1303, 0.5
        %v1462 = vmul.f32 %v1308, 0.5
        %v1463 = vmul.f32 %v1313, 0.5
        %v1464 = vmul.f32 %v1318, 0.5
        %v1465 = vmul.f32 %v1323, 0.5
        %v1466 = vmul.f32 %v1328, 0.5
        %v1467 = vmul.f32 %v1333, 0.5
        %v1468 = vmul.f32 %v1338, 0.5
        %v1469 = vmul.f32 %v1343, 0.5
        %v1470 = vmul.f32 %v1348, 0.5
        %v1471 = vmul.f32 %v1353, 0.5
        %v1472 = vmul.f32 %v1358, 0.5
        %v1473 = vmul.f32 %v1363, 0.5
        %v1474 = vmul.f32 %v1368, 0.5
        %v1475 = vmul.f32 %v1373, 0.5
        %v1476 = vmul.f32 %v1378, 0.5
        %v1477 = vmul.f32 %v1383, 0.5
        %v1478 = vmul.f32 %v1388, 0.5
        %v1479 = vmul.f32 %v1393, 0.5
        %v1480 = vmul.f32 %v1398, 0.5
        %v1481 = vmul.f32 %v1403, 0.5
        %v1482 = vmul.f32 %v1408, 0.5
        %v1483 = vmul.f32 %v1413, 0.5
        %v1484 = vmul.f32 %v1418, 0.5
        %v1485 = vmul.f32 %v1423, 0.5
        %v1486 = vmul.f32 %v1428, 0.5
        %v1487 = vmul.f32 %v1433, 0.5
        %v1488 = vmul.f32 %v1438, 0.5
        %v1489 = vmul.f32 %v1443, 0.5
        %v1490 = vmul.f32 %v1448, 0.5
        %v1491 = vmul.f32 %v1453, 0.5
        %v1492 = vmul.f32 %v1458, 0.5
        %v1493 = vmul.f32 %v1461, 1.442695
        %v1494 = vpow.pop %v1493
        %v1495 = vmul.f32 %v1462, 1.442695
        %v1496 = vpow.pop %v1495
        %v1497 = vmul.f32 %v1463, 1.442695
        %v1498 = vpow.pop %v1497
        %v1499 = vmul.f32 %v1464, 1.442695
        %v1500 = vpow.pop %v1499
        %v1501 = vmul.f32 %v1465, 1.442695
        %v1502 = vpow.pop %v1501
        %v1503 = vmul.f32 %v1466, 1.442695
        %v1504 = vpow.pop %v1503
        %v1505 = vmul.f32 %v1467, 1.442695
        %v1506 = vpow.pop %v1505
        %v1507 = vmul.f32 %v1468, 1.442695
        %v1508 = vpow.pop %v1507
        %v1509 = vmul.f32 %v1469, 1.442695
        %v1510 = vpow.pop %v1509
        %v1511 = vmul.f32 %v1470, 1.442695
        %v1512 = vpow.pop %v1511
        %v1513 = vmul.f32 %v1471, 1.442695
        %v1514 = vpow.pop %v1513
        %v1515 = vmul.f32 %v1472, 1.442695
        %v1516 = vpow.pop %v1515
        %v1517 = vmul.f32 %v1473, 1.442695
        %v1518 = vpow.pop %v1517
        %v1519 = vmul.f32 %v1474, 1.442695
        %v1520 = vpow.pop %v1519
        %v1521 = vmul.f32 %v1475, 1.442695
        %v1522 = vpow.pop %v1521
        %v1523 = vmul.f32 %v1476, 1.442695
        %v1524 = vpow.pop %v1523
        %v1525 = vmul.f32 %v1477, 1.442695
        %v1526 = vpow.pop %v1525
        %v1527 = vmul.f32 %v1478, 1.442695
        %v1528 = vpow.pop %v1527
        %v1529 = vmul.f32 %v1479, 1.442695
        %v1530 = vpow.pop %v1529
        %v1531 = vmul.f32 %v1480, 1.442695
        %v1532 = vpow.pop %v1531
        %v1533 = vmul.f32 %v1481, 1.442695
        %v1534 = vpow.pop %v1533
        %v1535 = vmul.f32 %v1482, 1.442695
        %v1536 = vpow.pop %v1535
        %v1537 = vmul.f32 %v1483, 1.442695
        %v1538 = vpow.pop %v1537
        %v1539 = vmul.f32 %v1484, 1.442695
        %v1540 = vpow.pop %v1539
        %v1541 = vmul.f32 %v1485, 1.442695
        %v1542 = vpow.pop %v1541
        %v1543 = vmul.f32 %v1486, 1.442695
        %v1544 = vpow.pop %v1543
        %v1545 = vmul.f32 %v1487, 1.442695
        %v1546 = vpow.pop %v1545
        %v1547 = vmul.f32 %v1488, 1.442695
        %v1548 = vpow.pop %v1547
        %v1549 = vmul.f32 %v1489, 1.442695
        %v1550 = vpow.pop %v1549
        %v1551 = vmul.f32 %v1490, 1.442695
        %v1552 = vpow.pop %v1551
        %v1553 = vmul.f32 %v1491, 1.442695
        %v1554 = vpow.pop %v1553
        %v1555 = vmul.f32 %v1492, 1.442695
        %v1556 = vpow.pop %v1555
        %v1557 = vmul.f32 %v218, %v1494
        %v1558 = vmul.f32 %v219, %v1496
        %v1559 = vmul.f32 %v220, %v1498
        %v1560 = vmul.f32 %v221, %v1500
        %v1561 = vmul.f32 %v222, %v1502
        %v1562 = vmul.f32 %v223, %v1504
        %v1563 = vmul.f32 %v224, %v1506
        %v1564 = vmul.f32 %v225, %v1508
        %v1565 = vmul.f32 %v226, %v1510
        %v1566 = vmul.f32 %v227, %v1512
        %v1567 = vmul.f32 %v228, %v1514
        %v1568 = vmul.f32 %v229, %v1516
        %v1569 = vmul.f32 %v230, %v1518
        %v1570 = vmul.f32 %v231, %v1520
        %v1571 = vmul.f32 %v232, %v1522
        %v1572 = vmul.f32 %v233, %v1524
        %v1573 = vmul.f32 %v234, %v1526
        %v1574 = vmul.f32 %v235, %v1528
        %v1575 = vmul.f32 %v236, %v1530
        %v1576 = vmul.f32 %v237, %v1532
        %v1577 = vmul.f32 %v238, %v1534
        %v1578 = vmul.f32 %v239, %v1536
        %v1579 = vmul.f32 %v240, %v1538
        %v1580 = vmul.f32 %v241, %v1540
        %v1581 = vmul.f32 %v242, %v1542
        %v1582 = vmul.f32 %v243, %v1544
        %v1583 = vmul.f32 %v244, %v1546
        %v1584 = vmul.f32 %v245, %v1548
        %v1585 = vmul.f32 %v246, %v1550
        %v1586 = vmul.f32 %v247, %v1552
        %v1587 = vmul.f32 %v248, %v1554
        %v1588 = vmul.f32 %v249, %v1556
        %v1589 = vadd.f32 %v1056, %v1557
        %v1590 = vadd.f32 %v1061, %v1558
        %v1591 = vadd.f32 %v1066, %v1559
        %v1592 = vadd.f32 %v1071, %v1560
        %v1593 = vadd.f32 %v1076, %v1561
        %v1594 = vadd.f32 %v1081, %v1562
        %v1595 = vadd.f32 %v1086, %v1563
        %v1596 = vadd.f32 %v1091, %v1564
        %v1597 = vadd.f32 %v1096, %v1565
        %v1598 = vadd.f32 %v1101, %v1566
        %v1599 = vadd.f32 %v1106, %v1567
        %v1600 = vadd.f32 %v1111, %v1568
        %v1601 = vadd.f32 %v1116, %v1569
        %v1602 = vadd.f32 %v1121, %v1570
        %v1603 = vadd.f32 %v1126, %v1571
        %v1604 = vadd.f32 %v1131, %v1572
        %v1605 = vadd.f32 %v1136, %v1573
        %v1606 = vadd.f32 %v1141, %v1574
        %v1607 = vadd.f32 %v1146, %v1575
        %v1608 = vadd.f32 %v1151, %v1576
        %v1609 = vadd.f32 %v1156, %v1577
        %v1610 = vadd.f32 %v1161, %v1578
        %v1611 = vadd.f32 %v1166, %v1579
        %v1612 = vadd.f32 %v1171, %v1580
        %v1613 = vadd.f32 %v1176, %v1581
        %v1614 = vadd.f32 %v1181, %v1582
        %v1615 = vadd.f32 %v1186, %v1583
        %v1616 = vadd.f32 %v1191, %v1584
        %v1617 = vadd.f32 %v1196, %v1585
        %v1618 = vadd.f32 %v1201, %v1586
        %v1619 = vadd.f32 %v1206, %v1587
        %v1620 = vadd.f32 %v1211, %v1588
        %s1621 = scalar_lea.vmem [#allocation5], 512
        %v1622 = vld [vmem:[%s1621] sm:$0xff]
        %v1623 = vld [vmem:[%s1621 + $0x8] sm:$0xff]
        %v1624 = vld [vmem:[%s1621 + $0x10] sm:$0xff]
        %v1625 = vld [vmem:[%s1621 + $0x18] sm:$0xff]
        %v1626 = vld [vmem:[%s1621 + $0x20] sm:$0xff]
        %v1627 = vld [vmem:[%s1621 + $0x28] sm:$0xff]
        %v1628 = vld [vmem:[%s1621 + $0x30] sm:$0xff]
        %v1629 = vld [vmem:[%s1621 + $0x38] sm:$0xff]
        %v1630 = vld [vmem:[%s1621 + $0x40] sm:$0xff]
        %v1631 = vld [vmem:[%s1621 + $0x48] sm:$0xff]
        %v1632 = vld [vmem:[%s1621 + $0x50] sm:$0xff]
        %v1633 = vld [vmem:[%s1621 + $0x58] sm:$0xff]
        %v1634 = vld [vmem:[%s1621 + $0x60] sm:$0xff]
        %v1635 = vld [vmem:[%s1621 + $0x68] sm:$0xff]
        %v1636 = vld [vmem:[%s1621 + $0x70] sm:$0xff]
        %v1637 = vld [vmem:[%s1621 + $0x78] sm:$0xff]
        %v1638 = vld [vmem:[#allocation7 + $0x4] sm:$0x1]
        %v1639 = vlaneseq
        %v1640 = vshrl.u32 %v1639, 7
        %v1641 = vsub.s32 0, %v1640
        %v1642 = vrot.slane %v1638, %v1641
        %1643 = vmatprep.subr.mxu0 0.0
        %1644 = vmatpush1.msra.mxu0 %v1637
        %1645 = vmatprep.subr.mxu0 0.0
        %1646 = vmatpush1.msra.mxu0 %v1636
        %1647 = vmatprep.subr.mxu0 0.0
        %1648 = vmatpush1.msra.mxu0 %v1635
        %1649 = vmatprep.subr.mxu0 0.0
        %1650 = vmatpush1.msra.mxu0 %v1634
        %1651 = vmatprep.subr.mxu0 0.0
        %1652 = vmatpush1.msra.mxu0 %v1633
        %1653 = vmatprep.subr.mxu0 0.0
        %1654 = vmatpush1.msra.mxu0 %v1632
        %1655 = vmatprep.subr.mxu0 0.0
        %1656 = vmatpush1.msra.mxu0 %v1631
        %1657 = vmatprep.subr.mxu0 0.0
        %1658 = vmatpush1.msra.mxu0 %v1630
        %1659 = vmatprep.subr.mxu0 0.0
        %1660 = vmatpush1.msra.mxu0 %v1629
        %1661 = vmatprep.subr.mxu0 0.0
        %1662 = vmatpush1.msra.mxu0 %v1628
        %1663 = vmatprep.subr.mxu0 0.0
        %1664 = vmatpush1.msra.mxu0 %v1627
        %1665 = vmatprep.subr.mxu0 0.0
        %1666 = vmatpush1.msra.mxu0 %v1626
        %1667 = vmatprep.subr.mxu0 0.0
        %1668 = vmatpush1.msra.mxu0 %v1625
        %1669 = vmatprep.subr.mxu0 0.0
        %1670 = vmatpush1.msra.mxu0 %v1624
        %1671 = vmatprep.subr.mxu0 0.0
        %1672 = vmatpush1.msra.mxu0 %v1623
        %1673 = vmatprep.subr.mxu0 0.0
        %1674 = vmatpush1.msra.mxu0 %v1622
        %1675 = vmatprep.subr.mxu0 0.0
        %1676 = vmatpush2.msra.mxu0 0.0
        %1677 = vmatprep.subr.mxu0 0.0
        %1678 = vmatpush2.msra.mxu0 0.0
        %1679 = vmatprep.subr.mxu0 0.0
        %1680 = vmatpush2.msra.mxu0 0.0
        %1681 = vmatprep.subr.mxu0 0.0
        %1682 = vmatpush2.msra.mxu0 0.0
        %1683 = vmatprep.subr.mxu0 0.0
        %1684 = vmatpush2.msra.mxu0 0.0
        %1685 = vmatprep.subr.mxu0 0.0
        %1686 = vmatpush2.msra.mxu0 0.0
        %1687 = vmatprep.subr.mxu0 0.0
        %1688 = vmatpush2.msra.mxu0 0.0
        %1689 = vmatprep.subr.mxu0 0.0
        %1690 = vmatpush2.msra.mxu0 0.0
        %1691 = vmatprep.subr.mxu0 0.0
        %1692 = vmatpush2.msra.mxu0 0.0
        %1693 = vmatprep.subr.mxu0 0.0
        %1694 = vmatpush2.msra.mxu0 0.0
        %1695 = vmatprep.subr.mxu0 0.0
        %1696 = vmatpush2.msra.mxu0 0.0
        %1697 = vmatprep.subr.mxu0 0.0
        %1698 = vmatpush2.msra.mxu0 0.0
        %1699 = vmatprep.subr.mxu0 0.0
        %1700 = vmatpush2.msra.mxu0 0.0
        %1701 = vmatprep.subr.mxu0 0.0
        %1702 = vmatpush2.msra.mxu0 0.0
        %1703 = vmatprep.subr.mxu0 0.0
        %1704 = vmatpush2.msra.mxu0 0.0
        %1705 = vmatprep.subr.mxu0 0.0
        %1706 = vmatpush2.msra.mxu0 0.0
        %1707 = vmatprep.mubr.f32.mxu0 0.0
        %1708 = vmatmul.mubr.f32.gmra.mxu0 %v1589
        %v1709 = vpop.f32.mrf.mxu0
        %v1710 = vadd.f32 %v1642, %v1709
        %v1711 = vpop.f32.mrf.mxu0
        %1712 = vmatprep.mubr.f32.mxu0 0.0
        %1713 = vmatmul.mubr.f32.gmra.mxu0 %v1590
        %v1714 = vpop.f32.mrf.mxu0
        %v1715 = vadd.f32 %v1642, %v1714
        %v1716 = vpop.f32.mrf.mxu0
        %1717 = vmatprep.mubr.f32.mxu0 0.0
        %1718 = vmatmul.mubr.f32.gmra.mxu0 %v1591
        %v1719 = vpop.f32.mrf.mxu0
        %v1720 = vadd.f32 %v1642, %v1719
        %v1721 = vpop.f32.mrf.mxu0
        %1722 = vmatprep.mubr.f32.mxu0 0.0
        %1723 = vmatmul.mubr.f32.gmra.mxu0 %v1592
        %v1724 = vpop.f32.mrf.mxu0
        %v1725 = vadd.f32 %v1642, %v1724
        %v1726 = vpop.f32.mrf.mxu0
        %1727 = vmatprep.mubr.f32.mxu0 0.0
        %1728 = vmatmul.mubr.f32.gmra.mxu0 %v1593
        %v1729 = vpop.f32.mrf.mxu0
        %v1730 = vadd.f32 %v1642, %v1729
        %v1731 = vpop.f32.mrf.mxu0
        %1732 = vmatprep.mubr.f32.mxu0 0.0
        %1733 = vmatmul.mubr.f32.gmra.mxu0 %v1594
        %v1734 = vpop.f32.mrf.mxu0
        %v1735 = vadd.f32 %v1642, %v1734
        %v1736 = vpop.f32.mrf.mxu0
        %1737 = vmatprep.mubr.f32.mxu0 0.0
        %1738 = vmatmul.mubr.f32.gmra.mxu0 %v1595
        %v1739 = vpop.f32.mrf.mxu0
        %v1740 = vadd.f32 %v1642, %v1739
        %v1741 = vpop.f32.mrf.mxu0
        %1742 = vmatprep.mubr.f32.mxu0 0.0
        %1743 = vmatmul.mubr.f32.gmra.mxu0 %v1596
        %v1744 = vpop.f32.mrf.mxu0
        %v1745 = vadd.f32 %v1642, %v1744
        %v1746 = vpop.f32.mrf.mxu0
        %1747 = vmatprep.mubr.f32.mxu0 0.0
        %1748 = vmatmul.mubr.f32.gmra.mxu0 %v1597
        %v1749 = vpop.f32.mrf.mxu0
        %v1750 = vadd.f32 %v1642, %v1749
        %v1751 = vpop.f32.mrf.mxu0
        %1752 = vmatprep.mubr.f32.mxu0 0.0
        %1753 = vmatmul.mubr.f32.gmra.mxu0 %v1598
        %v1754 = vpop.f32.mrf.mxu0
        %v1755 = vadd.f32 %v1642, %v1754
        %v1756 = vpop.f32.mrf.mxu0
        %1757 = vmatprep.mubr.f32.mxu0 0.0
        %1758 = vmatmul.mubr.f32.gmra.mxu0 %v1599
        %v1759 = vpop.f32.mrf.mxu0
        %v1760 = vadd.f32 %v1642, %v1759
        %v1761 = vpop.f32.mrf.mxu0
        %1762 = vmatprep.mubr.f32.mxu0 0.0
        %1763 = vmatmul.mubr.f32.gmra.mxu0 %v1600
        %v1764 = vpop.f32.mrf.mxu0
        %v1765 = vadd.f32 %v1642, %v1764
        %v1766 = vpop.f32.mrf.mxu0
        %1767 = vmatprep.mubr.f32.mxu0 0.0
        %1768 = vmatmul.mubr.f32.gmra.mxu0 %v1601
        %v1769 = vpop.f32.mrf.mxu0
        %v1770 = vadd.f32 %v1642, %v1769
        %v1771 = vpop.f32.mrf.mxu0
        %1772 = vmatprep.mubr.f32.mxu0 0.0
        %1773 = vmatmul.mubr.f32.gmra.mxu0 %v1602
        %v1774 = vpop.f32.mrf.mxu0
        %v1775 = vadd.f32 %v1642, %v1774
        %v1776 = vpop.f32.mrf.mxu0
        %1777 = vmatprep.mubr.f32.mxu0 0.0
        %1778 = vmatmul.mubr.f32.gmra.mxu0 %v1603
        %v1779 = vpop.f32.mrf.mxu0
        %v1780 = vadd.f32 %v1642, %v1779
        %v1781 = vpop.f32.mrf.mxu0
        %1782 = vmatprep.mubr.f32.mxu0 0.0
        %1783 = vmatmul.mubr.f32.gmra.mxu0 %v1604
        %v1784 = vpop.f32.mrf.mxu0
        %v1785 = vadd.f32 %v1642, %v1784
        %v1786 = vpop.f32.mrf.mxu0
        %1787 = vmatprep.mubr.f32.mxu0 0.0
        %1788 = vmatmul.mubr.f32.gmra.mxu0 %v1605
        %v1789 = vpop.f32.mrf.mxu0
        %v1790 = vadd.f32 %v1642, %v1789
        %v1791 = vpop.f32.mrf.mxu0
        %1792 = vmatprep.mubr.f32.mxu0 0.0
        %1793 = vmatmul.mubr.f32.gmra.mxu0 %v1606
        %v1794 = vpop.f32.mrf.mxu0
        %v1795 = vadd.f32 %v1642, %v1794
        %v1796 = vpop.f32.mrf.mxu0
        %1797 = vmatprep.mubr.f32.mxu0 0.0
        %1798 = vmatmul.mubr.f32.gmra.mxu0 %v1607
        %v1799 = vpop.f32.mrf.mxu0
        %v1800 = vadd.f32 %v1642, %v1799
        %v1801 = vpop.f32.mrf.mxu0
        %1802 = vmatprep.mubr.f32.mxu0 0.0
        %1803 = vmatmul.mubr.f32.gmra.mxu0 %v1608
        %v1804 = vpop.f32.mrf.mxu0
        %v1805 = vadd.f32 %v1642, %v1804
        %v1806 = vpop.f32.mrf.mxu0
        %1807 = vmatprep.mubr.f32.mxu0 0.0
        %1808 = vmatmul.mubr.f32.gmra.mxu0 %v1609
        %v1809 = vpop.f32.mrf.mxu0
        %v1810 = vadd.f32 %v1642, %v1809
        %v1811 = vpop.f32.mrf.mxu0
        %1812 = vmatprep.mubr.f32.mxu0 0.0
        %1813 = vmatmul.mubr.f32.gmra.mxu0 %v1610
        %v1814 = vpop.f32.mrf.mxu0
        %v1815 = vadd.f32 %v1642, %v1814
        %v1816 = vpop.f32.mrf.mxu0
        %1817 = vmatprep.mubr.f32.mxu0 0.0
        %1818 = vmatmul.mubr.f32.gmra.mxu0 %v1611
        %v1819 = vpop.f32.mrf.mxu0
        %v1820 = vadd.f32 %v1642, %v1819
        %v1821 = vpop.f32.mrf.mxu0
        %1822 = vmatprep.mubr.f32.mxu0 0.0
        %1823 = vmatmul.mubr.f32.gmra.mxu0 %v1612
        %v1824 = vpop.f32.mrf.mxu0
        %v1825 = vadd.f32 %v1642, %v1824
        %v1826 = vpop.f32.mrf.mxu0
        %1827 = vmatprep.mubr.f32.mxu0 0.0
        %1828 = vmatmul.mubr.f32.gmra.mxu0 %v1613
        %v1829 = vpop.f32.mrf.mxu0
        %v1830 = vadd.f32 %v1642, %v1829
        %v1831 = vpop.f32.mrf.mxu0
        %1832 = vmatprep.mubr.f32.mxu0 0.0
        %1833 = vmatmul.mubr.f32.gmra.mxu0 %v1614
        %v1834 = vpop.f32.mrf.mxu0
        %v1835 = vadd.f32 %v1642, %v1834
        %v1836 = vpop.f32.mrf.mxu0
        %1837 = vmatprep.mubr.f32.mxu0 0.0
        %1838 = vmatmul.mubr.f32.gmra.mxu0 %v1615
        %v1839 = vpop.f32.mrf.mxu0
        %v1840 = vadd.f32 %v1642, %v1839
        %v1841 = vpop.f32.mrf.mxu0
        %1842 = vmatprep.mubr.f32.mxu0 0.0
        %1843 = vmatmul.mubr.f32.gmra.mxu0 %v1616
        %v1844 = vpop.f32.mrf.mxu0
        %v1845 = vadd.f32 %v1642, %v1844
        %v1846 = vpop.f32.mrf.mxu0
        %1847 = vmatprep.mubr.f32.mxu0 0.0
        %1848 = vmatmul.mubr.f32.gmra.mxu0 %v1617
        %v1849 = vpop.f32.mrf.mxu0
        %v1850 = vadd.f32 %v1642, %v1849
        %v1851 = vpop.f32.mrf.mxu0
        %1852 = vmatprep.mubr.f32.mxu0 0.0
        %1853 = vmatmul.mubr.f32.gmra.mxu0 %v1618
        %v1854 = vpop.f32.mrf.mxu0
        %v1855 = vadd.f32 %v1642, %v1854
        %v1856 = vpop.f32.mrf.mxu0
        %1857 = vmatprep.mubr.f32.mxu0 0.0
        %1858 = vmatmul.mubr.f32.gmra.mxu0 %v1619
        %v1859 = vpop.f32.mrf.mxu0
        %v1860 = vadd.f32 %v1642, %v1859
        %v1861 = vpop.f32.mrf.mxu0
        %1862 = vmatprep.mubr.f32.mxu0 0.0
        %1863 = vmatmul.mubr.f32.gmra.mxu0 %v1620
        %v1864 = vpop.f32.mrf.mxu0
        %v1865 = vadd.f32 %v1642, %v1864
        %v1866 = vpop.f32.mrf.mxu0
        %1867 = vdwg.mxu0
        %v1868 = vmax.f32 %v1710, 0.0
        %v1869 = vmax.f32 %v1715, 0.0
        %v1870 = vmax.f32 %v1720, 0.0
        %v1871 = vmax.f32 %v1725, 0.0
        %v1872 = vmax.f32 %v1730, 0.0
        %v1873 = vmax.f32 %v1735, 0.0
        %v1874 = vmax.f32 %v1740, 0.0
        %v1875 = vmax.f32 %v1745, 0.0
        %v1876 = vmax.f32 %v1750, 0.0
        %v1877 = vmax.f32 %v1755, 0.0
        %v1878 = vmax.f32 %v1760, 0.0
        %v1879 = vmax.f32 %v1765, 0.0
        %v1880 = vmax.f32 %v1770, 0.0
        %v1881 = vmax.f32 %v1775, 0.0
        %v1882 = vmax.f32 %v1780, 0.0
        %v1883 = vmax.f32 %v1785, 0.0
        %v1884 = vmax.f32 %v1790, 0.0
        %v1885 = vmax.f32 %v1795, 0.0
        %v1886 = vmax.f32 %v1800, 0.0
        %v1887 = vmax.f32 %v1805, 0.0
        %v1888 = vmax.f32 %v1810, 0.0
        %v1889 = vmax.f32 %v1815, 0.0
        %v1890 = vmax.f32 %v1820, 0.0
        %v1891 = vmax.f32 %v1825, 0.0
        %v1892 = vmax.f32 %v1830, 0.0
        %v1893 = vmax.f32 %v1835, 0.0
        %v1894 = vmax.f32 %v1840, 0.0
        %v1895 = vmax.f32 %v1845, 0.0
        %v1896 = vmax.f32 %v1850, 0.0
        %v1897 = vmax.f32 %v1855, 0.0
        %v1898 = vmax.f32 %v1860, 0.0
        %v1899 = vmax.f32 %v1865, 0.0
        %s1900 = scalar_lea.vmem [#allocation5], 640
        %v1901 = vld [vmem:[%s1900] sm:$0xff]
        %v1902 = vld [vmem:[%s1900 + $0x8] sm:$0xff]
        %v1903 = vld [vmem:[%s1900 + $0x10] sm:$0xff]
        %v1904 = vld [vmem:[%s1900 + $0x18] sm:$0xff]
        %v1905 = vld [vmem:[%s1900 + $0x20] sm:$0xff]
        %v1906 = vld [vmem:[%s1900 + $0x28] sm:$0xff]
        %v1907 = vld [vmem:[%s1900 + $0x30] sm:$0xff]
        %v1908 = vld [vmem:[%s1900 + $0x38] sm:$0xff]
        %v1909 = vld [vmem:[%s1900 + $0x40] sm:$0xff]
        %v1910 = vld [vmem:[%s1900 + $0x48] sm:$0xff]
        %v1911 = vld [vmem:[%s1900 + $0x50] sm:$0xff]
        %v1912 = vld [vmem:[%s1900 + $0x58] sm:$0xff]
        %v1913 = vld [vmem:[%s1900 + $0x60] sm:$0xff]
        %v1914 = vld [vmem:[%s1900 + $0x68] sm:$0xff]
        %v1915 = vld [vmem:[%s1900 + $0x70] sm:$0xff]
        %v1916 = vld [vmem:[%s1900 + $0x78] sm:$0xff]
        %v1917 = vld [vmem:[#allocation7 + $0x5] sm:$0x1]
        %v1918 = vlaneseq
        %v1919 = vshrl.u32 %v1918, 7
        %v1920 = vsub.s32 0, %v1919
        %v1921 = vrot.slane %v1917, %v1920
        %1922 = vmatprep.subr.mxu0 0.0
        %1923 = vmatpush1.msra.mxu0 %v1916
        %1924 = vmatprep.subr.mxu0 0.0
        %1925 = vmatpush1.msra.mxu0 %v1915
        %1926 = vmatprep.subr.mxu0 0.0
        %1927 = vmatpush1.msra.mxu0 %v1914
        %1928 = vmatprep.subr.mxu0 0.0
        %1929 = vmatpush1.msra.mxu0 %v1913
        %1930 = vmatprep.subr.mxu0 0.0
        %1931 = vmatpush1.msra.mxu0 %v1912
        %1932 = vmatprep.subr.mxu0 0.0
        %1933 = vmatpush1.msra.mxu0 %v1911
        %1934 = vmatprep.subr.mxu0 0.0
        %1935 = vmatpush1.msra.mxu0 %v1910
        %1936 = vmatprep.subr.mxu0 0.0
        %1937 = vmatpush1.msra.mxu0 %v1909
        %1938 = vmatprep.subr.mxu0 0.0
        %1939 = vmatpush1.msra.mxu0 %v1908
        %1940 = vmatprep.subr.mxu0 0.0
        %1941 = vmatpush1.msra.mxu0 %v1907
        %1942 = vmatprep.subr.mxu0 0.0
        %1943 = vmatpush1.msra.mxu0 %v1906
        %1944 = vmatprep.subr.mxu0 0.0
        %1945 = vmatpush1.msra.mxu0 %v1905
        %1946 = vmatprep.subr.mxu0 0.0
        %1947 = vmatpush1.msra.mxu0 %v1904
        %1948 = vmatprep.subr.mxu0 0.0
        %1949 = vmatpush1.msra.mxu0 %v1903
        %1950 = vmatprep.subr.mxu0 0.0
        %1951 = vmatpush1.msra.mxu0 %v1902
        %1952 = vmatprep.subr.mxu0 0.0
        %1953 = vmatpush1.msra.mxu0 %v1901
        %1954 = vmatprep.subr.mxu0 0.0
        %1955 = vmatpush2.msra.mxu0 0.0
        %1956 = vmatprep.subr.mxu0 0.0
        %1957 = vmatpush2.msra.mxu0 0.0
        %1958 = vmatprep.subr.mxu0 0.0
        %1959 = vmatpush2.msra.mxu0 0.0
        %1960 = vmatprep.subr.mxu0 0.0
        %1961 = vmatpush2.msra.mxu0 0.0
        %1962 = vmatprep.subr.mxu0 0.0
        %1963 = vmatpush2.msra.mxu0 0.0
        %1964 = vmatprep.subr.mxu0 0.0
        %1965 = vmatpush2.msra.mxu0 0.0
        %1966 = vmatprep.subr.mxu0 0.0
        %1967 = vmatpush2.msra.mxu0 0.0
        %1968 = vmatprep.subr.mxu0 0.0
        %1969 = vmatpush2.msra.mxu0 0.0
        %1970 = vmatprep.subr.mxu0 0.0
        %1971 = vmatpush2.msra.mxu0 0.0
        %1972 = vmatprep.subr.mxu0 0.0
        %1973 = vmatpush2.msra.mxu0 0.0
        %1974 = vmatprep.subr.mxu0 0.0
        %1975 = vmatpush2.msra.mxu0 0.0
        %1976 = vmatprep.subr.mxu0 0.0
        %1977 = vmatpush2.msra.mxu0 0.0
        %1978 = vmatprep.subr.mxu0 0.0
        %1979 = vmatpush2.msra.mxu0 0.0
        %1980 = vmatprep.subr.mxu0 0.0
        %1981 = vmatpush2.msra.mxu0 0.0
        %1982 = vmatprep.subr.mxu0 0.0
        %1983 = vmatpush2.msra.mxu0 0.0
        %1984 = vmatprep.subr.mxu0 0.0
        %1985 = vmatpush2.msra.mxu0 0.0
        %1986 = vmatprep.mubr.f32.mxu0 0.0
        %1987 = vmatmul.mubr.f32.gmra.mxu0 %v1868
        %v1988 = vpop.f32.mrf.mxu0
        %v1989 = vadd.f32 %v1921, %v1988
        %v1990 = vpop.f32.mrf.mxu0
        %1991 = vmatprep.mubr.f32.mxu0 0.0
        %1992 = vmatmul.mubr.f32.gmra.mxu0 %v1869
        %v1993 = vpop.f32.mrf.mxu0
        %v1994 = vadd.f32 %v1921, %v1993
        %v1995 = vpop.f32.mrf.mxu0
        %1996 = vmatprep.mubr.f32.mxu0 0.0
        %1997 = vmatmul.mubr.f32.gmra.mxu0 %v1870
        %v1998 = vpop.f32.mrf.mxu0
        %v1999 = vadd.f32 %v1921, %v1998
        %v2000 = vpop.f32.mrf.mxu0
        %2001 = vmatprep.mubr.f32.mxu0 0.0
        %2002 = vmatmul.mubr.f32.gmra.mxu0 %v1871
        %v2003 = vpop.f32.mrf.mxu0
        %v2004 = vadd.f32 %v1921, %v2003
        %v2005 = vpop.f32.mrf.mxu0
        %2006 = vmatprep.mubr.f32.mxu0 0.0
        %2007 = vmatmul.mubr.f32.gmra.mxu0 %v1872
        %v2008 = vpop.f32.mrf.mxu0
        %v2009 = vadd.f32 %v1921, %v2008
        %v2010 = vpop.f32.mrf.mxu0
        %2011 = vmatprep.mubr.f32.mxu0 0.0
        %2012 = vmatmul.mubr.f32.gmra.mxu0 %v1873
        %v2013 = vpop.f32.mrf.mxu0
        %v2014 = vadd.f32 %v1921, %v2013
        %v2015 = vpop.f32.mrf.mxu0
        %2016 = vmatprep.mubr.f32.mxu0 0.0
        %2017 = vmatmul.mubr.f32.gmra.mxu0 %v1874
        %v2018 = vpop.f32.mrf.mxu0
        %v2019 = vadd.f32 %v1921, %v2018
        %v2020 = vpop.f32.mrf.mxu0
        %2021 = vmatprep.mubr.f32.mxu0 0.0
        %2022 = vmatmul.mubr.f32.gmra.mxu0 %v1875
        %v2023 = vpop.f32.mrf.mxu0
        %v2024 = vadd.f32 %v1921, %v2023
        %v2025 = vpop.f32.mrf.mxu0
        %2026 = vmatprep.mubr.f32.mxu0 0.0
        %2027 = vmatmul.mubr.f32.gmra.mxu0 %v1876
        %v2028 = vpop.f32.mrf.mxu0
        %v2029 = vadd.f32 %v1921, %v2028
        %v2030 = vpop.f32.mrf.mxu0
        %2031 = vmatprep.mubr.f32.mxu0 0.0
        %2032 = vmatmul.mubr.f32.gmra.mxu0 %v1877
        %v2033 = vpop.f32.mrf.mxu0
        %v2034 = vadd.f32 %v1921, %v2033
        %v2035 = vpop.f32.mrf.mxu0
        %2036 = vmatprep.mubr.f32.mxu0 0.0
        %2037 = vmatmul.mubr.f32.gmra.mxu0 %v1878
        %v2038 = vpop.f32.mrf.mxu0
        %v2039 = vadd.f32 %v1921, %v2038
        %v2040 = vpop.f32.mrf.mxu0
        %2041 = vmatprep.mubr.f32.mxu0 0.0
        %2042 = vmatmul.mubr.f32.gmra.mxu0 %v1879
        %v2043 = vpop.f32.mrf.mxu0
        %v2044 = vadd.f32 %v1921, %v2043
        %v2045 = vpop.f32.mrf.mxu0
        %2046 = vmatprep.mubr.f32.mxu0 0.0
        %2047 = vmatmul.mubr.f32.gmra.mxu0 %v1880
        %v2048 = vpop.f32.mrf.mxu0
        %v2049 = vadd.f32 %v1921, %v2048
        %v2050 = vpop.f32.mrf.mxu0
        %2051 = vmatprep.mubr.f32.mxu0 0.0
        %2052 = vmatmul.mubr.f32.gmra.mxu0 %v1881
        %v2053 = vpop.f32.mrf.mxu0
        %v2054 = vadd.f32 %v1921, %v2053
        %v2055 = vpop.f32.mrf.mxu0
        %2056 = vmatprep.mubr.f32.mxu0 0.0
        %2057 = vmatmul.mubr.f32.gmra.mxu0 %v1882
        %v2058 = vpop.f32.mrf.mxu0
        %v2059 = vadd.f32 %v1921, %v2058
        %v2060 = vpop.f32.mrf.mxu0
        %2061 = vmatprep.mubr.f32.mxu0 0.0
        %2062 = vmatmul.mubr.f32.gmra.mxu0 %v1883
        %v2063 = vpop.f32.mrf.mxu0
        %v2064 = vadd.f32 %v1921, %v2063
        %v2065 = vpop.f32.mrf.mxu0
        %2066 = vmatprep.mubr.f32.mxu0 0.0
        %2067 = vmatmul.mubr.f32.gmra.mxu0 %v1884
        %v2068 = vpop.f32.mrf.mxu0
        %v2069 = vadd.f32 %v1921, %v2068
        %v2070 = vpop.f32.mrf.mxu0
        %2071 = vmatprep.mubr.f32.mxu0 0.0
        %2072 = vmatmul.mubr.f32.gmra.mxu0 %v1885
        %v2073 = vpop.f32.mrf.mxu0
        %v2074 = vadd.f32 %v1921, %v2073
        %v2075 = vpop.f32.mrf.mxu0
        %2076 = vmatprep.mubr.f32.mxu0 0.0
        %2077 = vmatmul.mubr.f32.gmra.mxu0 %v1886
        %v2078 = vpop.f32.mrf.mxu0
        %v2079 = vadd.f32 %v1921, %v2078
        %v2080 = vpop.f32.mrf.mxu0
        %2081 = vmatprep.mubr.f32.mxu0 0.0
        %2082 = vmatmul.mubr.f32.gmra.mxu0 %v1887
        %v2083 = vpop.f32.mrf.mxu0
        %v2084 = vadd.f32 %v1921, %v2083
        %v2085 = vpop.f32.mrf.mxu0
        %2086 = vmatprep.mubr.f32.mxu0 0.0
        %2087 = vmatmul.mubr.f32.gmra.mxu0 %v1888
        %v2088 = vpop.f32.mrf.mxu0
        %v2089 = vadd.f32 %v1921, %v2088
        %v2090 = vpop.f32.mrf.mxu0
        %2091 = vmatprep.mubr.f32.mxu0 0.0
        %2092 = vmatmul.mubr.f32.gmra.mxu0 %v1889
        %v2093 = vpop.f32.mrf.mxu0
        %v2094 = vadd.f32 %v1921, %v2093
        %v2095 = vpop.f32.mrf.mxu0
        %2096 = vmatprep.mubr.f32.mxu0 0.0
        %2097 = vmatmul.mubr.f32.gmra.mxu0 %v1890
        %v2098 = vpop.f32.mrf.mxu0
        %v2099 = vadd.f32 %v1921, %v2098
        %v2100 = vpop.f32.mrf.mxu0
        %2101 = vmatprep.mubr.f32.mxu0 0.0
        %2102 = vmatmul.mubr.f32.gmra.mxu0 %v1891
        %v2103 = vpop.f32.mrf.mxu0
        %v2104 = vadd.f32 %v1921, %v2103
        %v2105 = vpop.f32.mrf.mxu0
        %2106 = vmatprep.mubr.f32.mxu0 0.0
        %2107 = vmatmul.mubr.f32.gmra.mxu0 %v1892
        %v2108 = vpop.f32.mrf.mxu0
        %v2109 = vadd.f32 %v1921, %v2108
        %v2110 = vpop.f32.mrf.mxu0
        %2111 = vmatprep.mubr.f32.mxu0 0.0
        %2112 = vmatmul.mubr.f32.gmra.mxu0 %v1893
        %v2113 = vpop.f32.mrf.mxu0
        %v2114 = vadd.f32 %v1921, %v2113
        %v2115 = vpop.f32.mrf.mxu0
        %2116 = vmatprep.mubr.f32.mxu0 0.0
        %2117 = vmatmul.mubr.f32.gmra.mxu0 %v1894
        %v2118 = vpop.f32.mrf.mxu0
        %v2119 = vadd.f32 %v1921, %v2118
        %v2120 = vpop.f32.mrf.mxu0
        %2121 = vmatprep.mubr.f32.mxu0 0.0
        %2122 = vmatmul.mubr.f32.gmra.mxu0 %v1895
        %v2123 = vpop.f32.mrf.mxu0
        %v2124 = vadd.f32 %v1921, %v2123
        %v2125 = vpop.f32.mrf.mxu0
        %2126 = vmatprep.mubr.f32.mxu0 0.0
        %2127 = vmatmul.mubr.f32.gmra.mxu0 %v1896
        %v2128 = vpop.f32.mrf.mxu0
        %v2129 = vadd.f32 %v1921, %v2128
        %v2130 = vpop.f32.mrf.mxu0
        %2131 = vmatprep.mubr.f32.mxu0 0.0
        %2132 = vmatmul.mubr.f32.gmra.mxu0 %v1897
        %v2133 = vpop.f32.mrf.mxu0
        %v2134 = vadd.f32 %v1921, %v2133
        %v2135 = vpop.f32.mrf.mxu0
        %2136 = vmatprep.mubr.f32.mxu0 0.0
        %2137 = vmatmul.mubr.f32.gmra.mxu0 %v1898
        %v2138 = vpop.f32.mrf.mxu0
        %v2139 = vadd.f32 %v1921, %v2138
        %v2140 = vpop.f32.mrf.mxu0
        %2141 = vmatprep.mubr.f32.mxu0 0.0
        %2142 = vmatmul.mubr.f32.gmra.mxu0 %v1899
        %v2143 = vpop.f32.mrf.mxu0
        %v2144 = vadd.f32 %v1921, %v2143
        %v2145 = vpop.f32.mrf.mxu0
        %2146 = vdwg.mxu0
        %v2147 = vxor.u32 %v1989, 2147483648
        %v2148 = vxor.u32 %v1994, 2147483648
        %v2149 = vxor.u32 %v1999, 2147483648
        %v2150 = vxor.u32 %v2004, 2147483648
        %v2151 = vxor.u32 %v2009, 2147483648
        %v2152 = vxor.u32 %v2014, 2147483648
        %v2153 = vxor.u32 %v2019, 2147483648
        %v2154 = vxor.u32 %v2024, 2147483648
        %v2155 = vxor.u32 %v2029, 2147483648
        %v2156 = vxor.u32 %v2034, 2147483648
        %v2157 = vxor.u32 %v2039, 2147483648
        %v2158 = vxor.u32 %v2044, 2147483648
        %v2159 = vxor.u32 %v2049, 2147483648
        %v2160 = vxor.u32 %v2054, 2147483648
        %v2161 = vxor.u32 %v2059, 2147483648
        %v2162 = vxor.u32 %v2064, 2147483648
        %v2163 = vxor.u32 %v2069, 2147483648
        %v2164 = vxor.u32 %v2074, 2147483648
        %v2165 = vxor.u32 %v2079, 2147483648
        %v2166 = vxor.u32 %v2084, 2147483648
        %v2167 = vxor.u32 %v2089, 2147483648
        %v2168 = vxor.u32 %v2094, 2147483648
        %v2169 = vxor.u32 %v2099, 2147483648
        %v2170 = vxor.u32 %v2104, 2147483648
        %v2171 = vxor.u32 %v2109, 2147483648
        %v2172 = vxor.u32 %v2114, 2147483648
        %v2173 = vxor.u32 %v2119, 2147483648
        %v2174 = vxor.u32 %v2124, 2147483648
        %v2175 = vxor.u32 %v2129, 2147483648
        %v2176 = vxor.u32 %v2134, 2147483648
        %v2177 = vxor.u32 %v2139, 2147483648
        %v2178 = vxor.u32 %v2144, 2147483648
        %v2179 = vmul.f32 %v2147, 1.442695
        %v2180 = vpow.pop %v2179
        %v2181 = vmul.f32 %v2148, 1.442695
        %v2182 = vpow.pop %v2181
        %v2183 = vmul.f32 %v2149, 1.442695
        %v2184 = vpow.pop %v2183
        %v2185 = vmul.f32 %v2150, 1.442695
        %v2186 = vpow.pop %v2185
        %v2187 = vmul.f32 %v2151, 1.442695
        %v2188 = vpow.pop %v2187
        %v2189 = vmul.f32 %v2152, 1.442695
        %v2190 = vpow.pop %v2189
        %v2191 = vmul.f32 %v2153, 1.442695
        %v2192 = vpow.pop %v2191
        %v2193 = vmul.f32 %v2154, 1.442695
        %v2194 = vpow.pop %v2193
        %v2195 = vmul.f32 %v2155, 1.442695
        %v2196 = vpow.pop %v2195
        %v2197 = vmul.f32 %v2156, 1.442695
        %v2198 = vpow.pop %v2197
        %v2199 = vmul.f32 %v2157, 1.442695
        %v2200 = vpow.pop %v2199
        %v2201 = vmul.f32 %v2158, 1.442695
        %v2202 = vpow.pop %v2201
        %v2203 = vmul.f32 %v2159, 1.442695
        %v2204 = vpow.pop %v2203
        %v2205 = vmul.f32 %v2160, 1.442695
        %v2206 = vpow.pop %v2205
        %v2207 = vmul.f32 %v2161, 1.442695
        %v2208 = vpow.pop %v2207
        %v2209 = vmul.f32 %v2162, 1.442695
        %v2210 = vpow.pop %v2209
        %v2211 = vmul.f32 %v2163, 1.442695
        %v2212 = vpow.pop %v2211
        %v2213 = vmul.f32 %v2164, 1.442695
        %v2214 = vpow.pop %v2213
        %v2215 = vmul.f32 %v2165, 1.442695
        %v2216 = vpow.pop %v2215
        %v2217 = vmul.f32 %v2166, 1.442695
        %v2218 = vpow.pop %v2217
        %v2219 = vmul.f32 %v2167, 1.442695
        %v2220 = vpow.pop %v2219
        %v2221 = vmul.f32 %v2168, 1.442695
        %v2222 = vpow.pop %v2221
        %v2223 = vmul.f32 %v2169, 1.442695
        %v2224 = vpow.pop %v2223
        %v2225 = vmul.f32 %v2170, 1.442695
        %v2226 = vpow.pop %v2225
        %v2227 = vmul.f32 %v2171, 1.442695
        %v2228 = vpow.pop %v2227
        %v2229 = vmul.f32 %v2172, 1.442695
        %v2230 = vpow.pop %v2229
        %v2231 = vmul.f32 %v2173, 1.442695
        %v2232 = vpow.pop %v2231
        %v2233 = vmul.f32 %v2174, 1.442695
        %v2234 = vpow.pop %v2233
        %v2235 = vmul.f32 %v2175, 1.442695
        %v2236 = vpow.pop %v2235
        %v2237 = vmul.f32 %v2176, 1.442695
        %v2238 = vpow.pop %v2237
        %v2239 = vmul.f32 %v2177, 1.442695
        %v2240 = vpow.pop %v2239
        %v2241 = vmul.f32 %v2178, 1.442695
        %v2242 = vpow.pop %v2241
        %v2243 = vadd.f32 %v2180, 1.0
        %v2244 = vadd.f32 %v2182, 1.0
        %v2245 = vadd.f32 %v2184, 1.0
        %v2246 = vadd.f32 %v2186, 1.0
        %v2247 = vadd.f32 %v2188, 1.0
        %v2248 = vadd.f32 %v2190, 1.0
        %v2249 = vadd.f32 %v2192, 1.0
        %v2250 = vadd.f32 %v2194, 1.0
        %v2251 = vadd.f32 %v2196, 1.0
        %v2252 = vadd.f32 %v2198, 1.0
        %v2253 = vadd.f32 %v2200, 1.0
        %v2254 = vadd.f32 %v2202, 1.0
        %v2255 = vadd.f32 %v2204, 1.0
        %v2256 = vadd.f32 %v2206, 1.0
        %v2257 = vadd.f32 %v2208, 1.0
        %v2258 = vadd.f32 %v2210, 1.0
        %v2259 = vadd.f32 %v2212, 1.0
        %v2260 = vadd.f32 %v2214, 1.0
        %v2261 = vadd.f32 %v2216, 1.0
        %v2262 = vadd.f32 %v2218, 1.0
        %v2263 = vadd.f32 %v2220, 1.0
        %v2264 = vadd.f32 %v2222, 1.0
        %v2265 = vadd.f32 %v2224, 1.0
        %v2266 = vadd.f32 %v2226, 1.0
        %v2267 = vadd.f32 %v2228, 1.0
        %v2268 = vadd.f32 %v2230, 1.0
        %v2269 = vadd.f32 %v2232, 1.0
        %v2270 = vadd.f32 %v2234, 1.0
        %v2271 = vadd.f32 %v2236, 1.0
        %v2272 = vadd.f32 %v2238, 1.0
        %v2273 = vadd.f32 %v2240, 1.0
        %v2274 = vadd.f32 %v2242, 1.0
        %v2275 = vrcp.pop %v2243
        %v2276 = vmul.f32 1.0, %v2275
        %v2277 = vrcp.pop %v2244
        %v2278 = vmul.f32 1.0, %v2277
        %v2279 = vrcp.pop %v2245
        %v2280 = vmul.f32 1.0, %v2279
        %v2281 = vrcp.pop %v2246
        %v2282 = vmul.f32 1.0, %v2281
        %v2283 = vrcp.pop %v2247
        %v2284 = vmul.f32 1.0, %v2283
        %v2285 = vrcp.pop %v2248
        %v2286 = vmul.f32 1.0, %v2285
        %v2287 = vrcp.pop %v2249
        %v2288 = vmul.f32 1.0, %v2287
        %v2289 = vrcp.pop %v2250
        %v2290 = vmul.f32 1.0, %v2289
        %v2291 = vrcp.pop %v2251
        %v2292 = vmul.f32 1.0, %v2291
        %v2293 = vrcp.pop %v2252
        %v2294 = vmul.f32 1.0, %v2293
        %v2295 = vrcp.pop %v2253
        %v2296 = vmul.f32 1.0, %v2295
        %v2297 = vrcp.pop %v2254
        %v2298 = vmul.f32 1.0, %v2297
        %v2299 = vrcp.pop %v2255
        %v2300 = vmul.f32 1.0, %v2299
        %v2301 = vrcp.pop %v2256
        %v2302 = vmul.f32 1.0, %v2301
        %v2303 = vrcp.pop %v2257
        %v2304 = vmul.f32 1.0, %v2303
        %v2305 = vrcp.pop %v2258
        %v2306 = vmul.f32 1.0, %v2305
        %v2307 = vrcp.pop %v2259
        %v2308 = vmul.f32 1.0, %v2307
        %v2309 = vrcp.pop %v2260
        %v2310 = vmul.f32 1.0, %v2309
        %v2311 = vrcp.pop %v2261
        %v2312 = vmul.f32 1.0, %v2311
        %v2313 = vrcp.pop %v2262
        %v2314 = vmul.f32 1.0, %v2313
        %v2315 = vrcp.pop %v2263
        %v2316 = vmul.f32 1.0, %v2315
        %v2317 = vrcp.pop %v2264
        %v2318 = vmul.f32 1.0, %v2317
        %v2319 = vrcp.pop %v2265
        %v2320 = vmul.f32 1.0, %v2319
        %v2321 = vrcp.pop %v2266
        %v2322 = vmul.f32 1.0, %v2321
        %v2323 = vrcp.pop %v2267
        %v2324 = vmul.f32 1.0, %v2323
        %v2325 = vrcp.pop %v2268
        %v2326 = vmul.f32 1.0, %v2325
        %v2327 = vrcp.pop %v2269
        %v2328 = vmul.f32 1.0, %v2327
        %v2329 = vrcp.pop %v2270
        %v2330 = vmul.f32 1.0, %v2329
        %v2331 = vrcp.pop %v2271
        %v2332 = vmul.f32 1.0, %v2331
        %v2333 = vrcp.pop %v2272
        %v2334 = vmul.f32 1.0, %v2333
        %v2335 = vrcp.pop %v2273
        %v2336 = vmul.f32 1.0, %v2335
        %v2337 = vrcp.pop %v2274
        %v2338 = vmul.f32 1.0, %v2337
        %v2339 = vlaneseq
        %v2340 = vand.u32 %v2339, 127
        %vm2341 = vcmp.lt.s32.totalorder %v2340, 64
        %v2342 = vsel %vm2341, %v2276, %v1056
        %v2343 = vsel %vm2341, %v2278, %v1061
        %v2344 = vsel %vm2341, %v2280, %v1066
        %v2345 = vsel %vm2341, %v2282, %v1071
        %v2346 = vsel %vm2341, %v2284, %v1076
        %v2347 = vsel %vm2341, %v2286, %v1081
        %v2348 = vsel %vm2341, %v2288, %v1086
        %v2349 = vsel %vm2341, %v2290, %v1091
        %v2350 = vsel %vm2341, %v2292, %v1096
        %v2351 = vsel %vm2341, %v2294, %v1101
        %v2352 = vsel %vm2341, %v2296, %v1106
        %v2353 = vsel %vm2341, %v2298, %v1111
        %v2354 = vsel %vm2341, %v2300, %v1116
        %v2355 = vsel %vm2341, %v2302, %v1121
        %v2356 = vsel %vm2341, %v2304, %v1126
        %v2357 = vsel %vm2341, %v2306, %v1131
        %v2358 = vsel %vm2341, %v2308, %v1136
        %v2359 = vsel %vm2341, %v2310, %v1141
        %v2360 = vsel %vm2341, %v2312, %v1146
        %v2361 = vsel %vm2341, %v2314, %v1151
        %v2362 = vsel %vm2341, %v2316, %v1156
        %v2363 = vsel %vm2341, %v2318, %v1161
        %v2364 = vsel %vm2341, %v2320, %v1166
        %v2365 = vsel %vm2341, %v2322, %v1171
        %v2366 = vsel %vm2341, %v2324, %v1176
        %v2367 = vsel %vm2341, %v2326, %v1181
        %v2368 = vsel %vm2341, %v2328, %v1186
        %v2369 = vsel %vm2341, %v2330, %v1191
        %v2370 = vsel %vm2341, %v2332, %v1196
        %v2371 = vsel %vm2341, %v2334, %v1201
        %v2372 = vsel %vm2341, %v2336, %v1206
        %v2373 = vsel %vm2341, %v2338, %v1211
        %2374 = vst [vmem:[%s215] sm:$0xff] %v2342
        %2375 = vst [vmem:[%s215 + $0x8] sm:$0xff] %v2343
        %2376 = vst [vmem:[%s215 + $0x10] sm:$0xff] %v2344
        %2377 = vst [vmem:[%s215 + $0x18] sm:$0xff] %v2345
        %2378 = vst [vmem:[%s215 + $0x20] sm:$0xff] %v2346
        %2379 = vst [vmem:[%s215 + $0x28] sm:$0xff] %v2347
        %2380 = vst [vmem:[%s215 + $0x30] sm:$0xff] %v2348
        %2381 = vst [vmem:[%s215 + $0x38] sm:$0xff] %v2349
        %2382 = vst [vmem:[%s215 + $0x40] sm:$0xff] %v2350
        %2383 = vst [vmem:[%s215 + $0x48] sm:$0xff] %v2351
        %2384 = vst [vmem:[%s215 + $0x50] sm:$0xff] %v2352
        %2385 = vst [vmem:[%s215 + $0x58] sm:$0xff] %v2353
        %2386 = vst [vmem:[%s215 + $0x60] sm:$0xff] %v2354
        %2387 = vst [vmem:[%s215 + $0x68] sm:$0xff] %v2355
        %2388 = vst [vmem:[%s215 + $0x70] sm:$0xff] %v2356
        %2389 = vst [vmem:[%s215 + $0x78] sm:$0xff] %v2357
        %2390 = vst [vmem:[%s215 + $0x80] sm:$0xff] %v2358
        %2391 = vst [vmem:[%s215 + $0x88] sm:$0xff] %v2359
        %2392 = vst [vmem:[%s215 + $0x90] sm:$0xff] %v2360
        %2393 = vst [vmem:[%s215 + $0x98] sm:$0xff] %v2361
        %2394 = vst [vmem:[%s215 + $0xa0] sm:$0xff] %v2362
        %2395 = vst [vmem:[%s215 + $0xa8] sm:$0xff] %v2363
        %2396 = vst [vmem:[%s215 + $0xb0] sm:$0xff] %v2364
        %2397 = vst [vmem:[%s215 + $0xb8] sm:$0xff] %v2365
        %2398 = vst [vmem:[%s215 + $0xc0] sm:$0xff] %v2366
        %2399 = vst [vmem:[%s215 + $0xc8] sm:$0xff] %v2367
        %2400 = vst [vmem:[%s215 + $0xd0] sm:$0xff] %v2368
        %2401 = vst [vmem:[%s215 + $0xd8] sm:$0xff] %v2369
        %2402 = vst [vmem:[%s215 + $0xe0] sm:$0xff] %v2370
        %2403 = vst [vmem:[%s215 + $0xe8] sm:$0xff] %v2371
        %2404 = vst [vmem:[%s215 + $0xf0] sm:$0xff] %v2372
        %2405 = vst [vmem:[%s215 + $0xf8] sm:$0xff] %v2373
        %s2406 = sand.u32 %s97, 1
        %s2407 = scalar_lea.sflag [#allocation4], %s2406
        %s2408 = sand.u32 %s97, 1
        %s2409 = smul.addr %s2408, 256
        %s2410 = scalar_lea.vmem [#allocation8], %s2409
        // Predicated region
        $region45: #{tpu_custom_call.1} parent=31 // pred_check
          %p2411 = pneg %p107
        $region46: #{tpu_custom_call.1} parent=31 // pred_check_branch
          %2413 = sbr.rel (%p2411) target = $region48
        $region47: #{tpu_custom_call.1} parent=31 // pred_region
          %s2414 = smul.u32 32, %s21
          %s2416 = ssub.s32 4096, 4096
          %2417 = vsyncadd %s2407, %s2416
          %s2418 = smul.addr %s2414, 128
          %s2419 = scalar_lea.hbm %s3, %s2418
          %s2420 = sshll.u32 %s2410, 4
          %s2421 = int_to_ptr.vmem [resolvable:$true] %s2420
          %2426 = dma.vmem_to_hbm [thread:$0]  %s2421, 4096, %s2419, %s2407, 128, 128, 8
        $region48: #{tpu_custom_call.1} parent=31 // pred_fallthru
          _
      $region32: #{tpu_custom_call.1} parent=5 // pred_fallthru
        _
      %p2427 = scmp.le.s32.totalorder 2, %s16
      // Predicated region
      $region49: #{tpu_custom_call.1} parent=5 // pred_check
        %p2428 = pneg %p2427
      $region50: #{tpu_custom_call.1} parent=5 // pred_check_branch
        %2430 = sbr.rel (%p2428) target = $region52
      $region51: #{tpu_custom_call.1} parent=5 // pred_region
        %s2431 = ssub.s32 %s16, 2
        // Predicated region
        $region53: #{tpu_custom_call.1} parent=51 // pred_check
          %p2432 = pneg %p113
        $region54: #{tpu_custom_call.1} parent=51 // pred_check_branch
          %2434 = sbr.rel (%p2432) target = $region56
        $region55: #{tpu_custom_call.1} parent=51 // pred_region
          %s2435 = sand.u32 %s98, 1
          %s2436 = scalar_lea.sflag [#allocation4], %s2435
          %s2437 = sand.u32 %s98, 1
          %s2438 = smul.addr %s2437, 256
          %s2439 = scalar_lea.vmem [#allocation8], %s2438
          %2440 = dma.done %s2436, 4096
        $region56: #{tpu_custom_call.1} parent=51 // pred_fallthru
          _
      $region52: #{tpu_custom_call.1} parent=5 // pred_fallthru
        _
    $region6: #{tpu_custom_call.1} parent=1 // loop_footer
      %s20 = sadd.s32 1, %s16
    $region7: #{tpu_custom_call.1} parent=1 // loop_footer_branch
      %15 = sbr.rel target = $region3
    $region8: #{tpu_custom_call.1} parent=1 // loop_exit
      _
    %2441 = vsyncpa [#allocation3], 1
    %s2442 = scalar_lea.sflag [#allocation3], 1
    %2443 = vsyncpa %s2442, 1
    %2444 = vsyncpa [#allocation6], 1
    %2445 = vsyncpa [#allocation4], 1
    %s2446 = scalar_lea.sflag [#allocation4], 1
    %2447 = vsyncpa %s2446, 1

</llo_original>
